<compile_context>
chip_gen: v7x
topology: tpu7x:2x2x1
jax: 0.10.0
libtpu: 0.0.40
codegen_flags: <defaults>
</compile_context>

<pallas_src>
from functools import partial

import jax
import jax.numpy as jnp
import numpy as np
from jax import lax
from jax.experimental import pallas as pl
from jax.experimental.pallas import tpu as pltpu

_LANE = 128          # lane width: class / feature axes padded to this
_DEFAULT_TK = 256    # K tile of the feature-extractor matmul

# dot_general dimension numbers for 2-D operands
_NT = (((1,), (1,)), ((), ()))   # (m,k)·(n,k) -> (m,n)   "A @ B^T"
_TN = (((0,), (0,)), ((), ()))   # (k,m)·(k,n) -> (m,n)   "A^T @ B"


def _round_up(v, m):
    return (v + m - 1) // m * m


# ---------------------------------------------------------------------------
# Fused kernel: feature extractor -> classifier -> update_CV -> isda_aug
# grid = (K // tk,): a pure reduction axis ("arbitrary"); the epilogue runs
# once, at the last K step, entirely out of VMEM.
# ---------------------------------------------------------------------------
def _isda_fused_kernel(ratio_ref,                       # SMEM (1,)        f32
                       x_ref,                           # (N, tk)          bf16
                       wft_ref,                         # (tk, Ap)         bf16
                       bf_ref,                          # (1, Ap)          f32
                       wc_ref,                          # (Cp, Ap)         f32
                       bc_ref,                          # (1, Cp)          f32
                       onehot_ref,                      # (N, Cp)          f32
                       ave_ref, cov_ref, amt_ref,       # (Cp,Ap)x2,(Cp,1) f32
                       aug_y_ref, y_ref,                # (N, Cp)          f32
                       cov_out_ref, ave_out_ref,        # (Cp, Ap)         f32
                       amt_out_ref,                     # (Cp, 1)          f32
                       facc_ref):                       # VMEM (N, Ap)     f32
    k = pl.program_id(0)
    nk = pl.num_programs(0)

    # ---- feature extractor: K-tiled bf16 MXU matmul, f32 accumulation -----
    @pl.when(k == 0)
    def _():
        facc_ref[...] = jnp.zeros_like(facc_ref)

    facc_ref[...] += jnp.dot(x_ref[...], wft_ref[...],
                             preferred_element_type=jnp.float32)

    # ---- epilogue: runs once after the K reduction is complete ------------
    @pl.when(k == nk - 1)
    def _():
        feats = facc_ref[...] + bf_ref[...]            # (N, Ap) f32
        w = wc_ref[...]                                # (Cp, Ap) classifier weight
        oh = onehot_ref[...]                           # (N, Cp)
        ave_old = ave_ref[...]
        cov_old = cov_ref[...]
        amt_old = amt_ref[...]                         # (Cp, 1)
        ratio = ratio_ref[0]
        n = feats.shape[0]

        # classifier: y = feats @ W^T + b   (NT matmul, no transpose materialized)
        y = lax.dot_general(feats, w, _NT,
                            preferred_element_type=jnp.float32) + bc_ref[...]
        y_ref[...] = y

        # ---- EstimatorCV.update_CV: per-class moments via onehot^T @ (.) --
        ones_n = jnp.ones((n, 1), jnp.float32)
        counts = lax.dot_general(oh, ones_n, _TN,
                                 preferred_element_type=jnp.float32)      # (Cp,1)
        sum_f = lax.dot_general(oh, feats, _TN,
                                preferred_element_type=jnp.float32)       # (Cp,Ap)
        sq_f = lax.dot_general(oh, feats * feats, _TN,
                               preferred_element_type=jnp.float32)        # (Cp,Ap)

        counts_c = jnp.where(counts == 0.0, 1.0, counts)   # torch: Amount_CxA[==0] = 1
        ave = sum_f / counts_c                              # ave_CxA
        # sum_n onehot*(f - ave)^2  ==  sq_f - 2*ave*sum_f + counts*ave^2
        var_t = (sq_f - 2.0 * ave * sum_f + counts * ave * ave) / counts_c

        denom = counts + amt_old                                          # (Cp,1)
        weight = jnp.where(denom == 0.0, 0.0,
                           counts / jnp.where(denom == 0.0, 1.0, denom))  # 0/0 -> 0

        cov_new = (cov_old * (1.0 - weight) + var_t * weight
                   + weight * (1.0 - weight) * (ave_old - ave) ** 2)
        cov_out_ref[...] = cov_new
        ave_out_ref[...] = ave_old * (1.0 - weight) + ave * weight
        amt_out_ref[...] = amt_old + counts

        # ---- isda_aug: sigma2 = sum_a (W[c]-W[label])^2 * CV[label] -------
        w_sel = jnp.dot(oh, w, preferred_element_type=jnp.float32)        # W[label_n]
        cv_sel = jnp.dot(oh, cov_new, preferred_element_type=jnp.float32)  # CV[label_n]

        t1 = lax.dot_general(cv_sel, w * w, _NT,
                             preferred_element_type=jnp.float32)          # (N,Cp)
        t2 = lax.dot_general(w_sel * cv_sel, w, _NT,
                             preferred_element_type=jnp.float32)          # (N,Cp)
        t3 = jnp.sum(w_sel * w_sel * cv_sel, axis=1, keepdims=True)       # (N,1)

        sigma2 = ratio * (t1 - 2.0 * t2 + t3)
        aug_y_ref[...] = y + 0.5 * sigma2


@partial(jax.jit, static_argnames=("tk",), donate_argnums=(7, 8, 9))
def _fused_forward(ratio, x_p, wft_p, bf_p, wc_p, bc_p, onehot_p,
                   ave_p, cov_p, amt_p, *, tk):
    n, k_pad = x_p.shape
    a_pad = wft_p.shape[1]
    c_pad = wc_p.shape[0]
    nk = k_pad // tk

    grid_spec = pltpu.PrefetchScalarGridSpec(
        num_scalar_prefetch=0,
        grid=(nk,),
        in_specs=[
            pl.BlockSpec(memory_space=pltpu.MemorySpace.SMEM),    # ratio
            pl.BlockSpec((n, tk), lambda k: (0, k)),              # x (K-tiled)
            pl.BlockSpec((tk, a_pad), lambda k: (k, 0)),          # W_feat^T (K-tiled)
            pl.BlockSpec((1, a_pad), lambda k: (0, 0)),           # b_feat
            pl.BlockSpec((c_pad, a_pad), lambda k: (0, 0)),       # W_cls
            pl.BlockSpec((1, c_pad), lambda k: (0, 0)),           # b_cls
            pl.BlockSpec((n, c_pad), lambda k: (0, 0)),           # onehot
            pl.BlockSpec((c_pad, a_pad), lambda k: (0, 0)),       # Ave
            pl.BlockSpec((c_pad, a_pad), lambda k: (0, 0)),       # CoVariance
            pl.BlockSpec((c_pad, 1), lambda k: (0, 0)),           # Amount
        ],
        out_specs=(
            pl.BlockSpec((n, c_pad), lambda k: (0, 0)),           # aug_y
            pl.BlockSpec((n, c_pad), lambda k: (0, 0)),           # y
            pl.BlockSpec((c_pad, a_pad), lambda k: (0, 0)),       # CoVariance_new
            pl.BlockSpec((c_pad, a_pad), lambda k: (0, 0)),       # Ave_new
            pl.BlockSpec((c_pad, 1), lambda k: (0, 0)),           # Amount_new
        ),
        scratch_shapes=[pltpu.VMEM((n, a_pad), jnp.float32)],     # feature accumulator
    )

    return pl.pallas_call(
        _isda_fused_kernel,
        grid_spec=grid_spec,
        out_shape=(
            jax.ShapeDtypeStruct((n, c_pad), jnp.float32),
            jax.ShapeDtypeStruct((n, c_pad), jnp.float32),
            jax.ShapeDtypeStruct((c_pad, a_pad), jnp.float32),
            jax.ShapeDtypeStruct((c_pad, a_pad), jnp.float32),
            jax.ShapeDtypeStruct((c_pad, 1), jnp.float32),
        ),
        # estimator state updated in place (P8): Ave->Ave_new, CoV->CoV_new, Amt->Amt_new
        input_output_aliases={7: 3, 8: 2, 9: 4},
        compiler_params=pltpu.CompilerParams(
            dimension_semantics=("arbitrary",)),   # K is a reduction axis
    )(ratio, x_p, wft_p, bf_p, wc_p, bc_p, onehot_p, ave_p, cov_p, amt_p)


# ---------------------------------------------------------------------------
# One-time parameter preparation (pre-transpose + lane padding; no per-call
# transpose / padding of weights) and padded estimator state init.
# ---------------------------------------------------------------------------
def prepare_isda(params, class_num, *, tk=_DEFAULT_TK):
    a, in_dim = params["w_feat"].shape        # (FEATURE_NUM, Cin*H*W)
    c = class_num
    a_pad = _round_up(a, _LANE)
    c_pad = _round_up(c, _LANE)
    tk = min(tk, _round_up(in_dim, _LANE))
    k_pad = _round_up(in_dim, tk)

    w_feat_t = jnp.zeros((k_pad, a_pad), jnp.bfloat16)
    w_feat_t = w_feat_t.at[:in_dim, :a].set(
        jnp.transpose(params["w_feat"]).astype(jnp.bfloat16))
    b_feat = jnp.zeros((1, a_pad), jnp.float32).at[0, :a].set(
        params["b_feat"].astype(jnp.float32))
    w_cls = jnp.zeros((c_pad, a_pad), jnp.float32).at[:c, :a].set(
        params["w_cls"].astype(jnp.float32))
    b_cls = jnp.zeros((1, c_pad), jnp.float32).at[0, :c].set(
        params["b_cls"].astype(jnp.float32))

    return dict(class_num=c, feature_num=a, in_dim=in_dim, tk=tk,
                w_feat_t=w_feat_t, b_feat=b_feat, w_cls=w_cls, b_cls=b_cls)


def init_estimator(feature_num, class_num):
    a_pad = _round_up(feature_num, _LANE)
    c_pad = _round_up(class_num, _LANE)
    return {"cov": jnp.zeros((c_pad, a_pad), jnp.float32),
            "ave": jnp.zeros((c_pad, a_pad), jnp.float32),
            "amount": jnp.zeros((c_pad, 1), jnp.float32)}


# ---------------------------------------------------------------------------
# ISDALoss.forward (functional; estimator state threaded explicitly)
# ---------------------------------------------------------------------------
def isda_loss_forward(prep, est_state, x, target_x, ratio):
    n = x.shape[0]
    c = prep["class_num"]
    c_pad = prep["w_cls"].shape[0]
    k_pad = prep["w_feat_t"].shape[0]

    x_flat = x.reshape(n, -1).astype(jnp.bfloat16)   # NCHW -> (N, Cin*H*W), bf16 MXU input
    in_dim = x_flat.shape[1]
    if in_dim != k_pad:
        x_flat = jnp.pad(x_flat, ((0, 0), (0, k_pad - in_dim)))

    onehot = jax.nn.one_hot(target_x, c_pad, dtype=jnp.float32)   # scatter_ equivalent

    aug_y_p, y_p, cov_new, ave_new, amt_new = _fused_forward(
        jnp.asarray([ratio], jnp.float32),
        x_flat, prep["w_feat_t"], prep["b_feat"], prep["w_cls"], prep["b_cls"],
        onehot, est_state["ave"], est_state["cov"], est_state["amount"],
        tk=prep["tk"])

    new_state = {"cov": cov_new, "ave": ave_new, "amount": amt_new}
    return (aug_y_p[:, :c], y_p[:, :c]), new_state


# ---------------------------------------------------------------------------
# Pure-JAX reference (mirrors the torch code) for correctness checking.
# The feature matmul uses the same bf16 inputs / f32 accumulation as the kernel.
# ---------------------------------------------------------------------------
def reference_forward(params, est_state, x, target_x, ratio, class_num):
    n = x.shape[0]
    xf = x.reshape(n, -1).astype(jnp.float32)
    feats = jnp.dot(xf.astype(jnp.bfloat16),
                    jnp.transpose(params["w_feat"]).astype(jnp.bfloat16),
                    preferred_element_type=jnp.float32) + params["b_feat"]
    y = feats @ params["w_cls"].T + params["b_cls"]

    a = feats.shape[1]
    c = class_num
    onehot = jax.nn.one_hot(target_x, c, dtype=jnp.float32)
    ave_old, cov_old, amt_old = est_state["ave"], est_state["cov"], est_state["amount"]

    oh3 = jnp.broadcast_to(onehot[:, :, None], (n, c, a))
    fbs = feats[:, None, :] * oh3
    counts = onehot.sum(0)                                        # (C,)
    amount_cxa = jnp.broadcast_to(counts[:, None], (c, a))
    amount_clamped = jnp.where(amount_cxa == 0.0, 1.0, amount_cxa)
    ave = fbs.sum(0) / amount_clamped
    var_t = ((fbs - ave[None] * oh3) ** 2).sum(0) / amount_clamped
    denom = counts + amt_old
    weight = jnp.where(denom == 0.0, 0.0,
                       counts / jnp.where(denom == 0.0, 1.0, denom))[:, None]
    additional = weight * (1.0 - weight) * (ave_old - ave) ** 2
    cov = cov_old * (1.0 - weight) + var_t * weight + additional
    ave_new = ave_old * (1.0 - weight) + ave * weight
    amt_new = amt_old + counts

    w = params["w_cls"]
    w_sel = w[target_x]
    cv_sel = cov[target_x]
    diff = w[None, :, :] - w_sel[:, None, :]
    sigma2 = ratio * (diff * diff * cv_sel[:, None, :]).sum(2)
    return (y + 0.5 * sigma2, y), {"cov": cov, "ave": ave_new, "amount": amt_new}


# ---------------------------------------------------------------------------
if __name__ == "__main__":
    N, CIN, H, W = 8, 4, 16, 16        # x: NCHW
    FEATURE_NUM = 32                   # A
    CLASS_NUM = 8                      # C
    RATIO = 0.5
    IN_DIM = CIN * H * W

    key = jax.random.PRNGKey(0)
    k_x, k_wf, k_bf, k_wc, k_bc, k_lbl = jax.random.split(key, 6)

    x = jax.random.normal(k_x, (N, CIN, H, W), dtype=jnp.float32)
    target_x = jax.random.randint(k_lbl, (N,), 0, CLASS_NUM, dtype=jnp.int32)

    params = {
        "w_feat": jax.random.normal(k_wf, (FEATURE_NUM, IN_DIM), jnp.float32)
        / jnp.sqrt(IN_DIM),
        "b_feat": jax.random.normal(k_bf, (FEATURE_NUM,), jnp.float32) * 0.01,
        "w_cls": jax.random.normal(k_wc, (CLASS_NUM, FEATURE_NUM), jnp.float32)
        / jnp.sqrt(FEATURE_NUM),
        "b_cls": jax.random.normal(k_bc, (CLASS_NUM,), jnp.float32) * 0.01,
    }

    prep = prepare_isda(params, CLASS_NUM)
    est_state = init_estimator(FEATURE_NUM, CLASS_NUM)   # torch.zeros, lane-padded

    (aug_y, y), new_state = isda_loss_forward(prep, est_state, x, target_x, RATIO)
    aug_y = jax.block_until_ready(aug_y)
    y = jax.block_until_ready(y)
    jax.block_until_ready(new_state["cov"])

    # Reference (unpadded estimator state = torch.zeros).
    ref_state0 = {"cov": jnp.zeros((CLASS_NUM, FEATURE_NUM), jnp.float32),
                  "ave": jnp.zeros((CLASS_NUM, FEATURE_NUM), jnp.float32),
                  "amount": jnp.zeros((CLASS_NUM,), jnp.float32)}
    (ref_aug, ref_y), ref_state = reference_forward(
        params, ref_state0, x, target_x, RATIO, CLASS_NUM)

    # MXU f32 matmuls may use reduced internal precision on some generations,
    # so compare at 1e-2 (values are O(1); real bugs are orders of magnitude off).
    tol = dict(rtol=1e-2, atol=1e-2)
    np.testing.assert_allclose(np.asarray(y), np.asarray(ref_y), **tol)
    np.testing.assert_allclose(np.asarray(aug_y), np.asarray(ref_aug), **tol)
    np.testing.assert_allclose(
        np.asarray(new_state["cov"][:CLASS_NUM, :FEATURE_NUM]),
        np.asarray(ref_state["cov"]), **tol)
    np.testing.assert_allclose(
        np.asarray(new_state["ave"][:CLASS_NUM, :FEATURE_NUM]),
        np.asarray(ref_state["ave"]), **tol)
    np.testing.assert_allclose(
        np.asarray(new_state["amount"][:CLASS_NUM, 0]),
        np.asarray(ref_state["amount"]), **tol)

    assert aug_y.shape == (N, CLASS_NUM) and y.shape == (N, CLASS_NUM)
    assert bool(jnp.all(jnp.isfinite(aug_y))) and bool(jnp.all(jnp.isfinite(y)))

    print("KERNEL_OK")
</pallas_src>

<mosaic_0001>
module attributes {stable_mosaic.version = 11 : i64} {
  func.func @_isda_fused_kernel(%arg0: i32, %arg1: memref<1xf32, #tpu.memory_space<smem>>, %arg2: memref<8x256xbf16, #tpu.memory_space<vmem>>, %arg3: memref<256x128xbf16, #tpu.memory_space<vmem>>, %arg4: memref<1x128xf32, #tpu.memory_space<vmem>>, %arg5: memref<128x128xf32, #tpu.memory_space<vmem>>, %arg6: memref<1x128xf32, #tpu.memory_space<vmem>>, %arg7: memref<8x128xf32, #tpu.memory_space<vmem>>, %arg8: memref<128x128xf32, #tpu.memory_space<vmem>>, %arg9: memref<128x128xf32, #tpu.memory_space<vmem>>, %arg10: memref<128x1xf32, #tpu.memory_space<vmem>>, %arg11: memref<8x128xf32, #tpu.memory_space<vmem>>, %arg12: memref<8x128xf32, #tpu.memory_space<vmem>>, %arg13: memref<128x128xf32, #tpu.memory_space<vmem>>, %arg14: memref<128x128xf32, #tpu.memory_space<vmem>>, %arg15: memref<128x1xf32, #tpu.memory_space<vmem>>, %arg16: memref<8x128xf32, #tpu.memory_space<vmem>>) attributes {dimension_semantics = [#tpu.dimension_semantics<arbitrary>], iteration_bounds = array<i64: 4>, scalar_prefetch = 0 : i64, scratch_operands = 1 : i64, tpu.core_type = #tpu.core_type<tc>, window_params = [{transform_indices = @transform_0, window_bounds = array<i64: 1>}, {transform_indices = @transform_1, window_bounds = array<i64: 8, 256>}, {transform_indices = @transform_2, window_bounds = array<i64: 256, 128>}, {pipeline_mode = #tpu.pipeline_mode<synchronous>, transform_indices = @transform_3, window_bounds = array<i64: 1, 128>}, {pipeline_mode = #tpu.pipeline_mode<synchronous>, transform_indices = @transform_4, window_bounds = array<i64: 128, 128>}, {pipeline_mode = #tpu.pipeline_mode<synchronous>, transform_indices = @transform_5, window_bounds = array<i64: 1, 128>}, {pipeline_mode = #tpu.pipeline_mode<synchronous>, transform_indices = @transform_6, window_bounds = array<i64: 8, 128>}, {pipeline_mode = #tpu.pipeline_mode<synchronous>, transform_indices = @transform_7, window_bounds = array<i64: 128, 128>}, {pipeline_mode = #tpu.pipeline_mode<synchronous>, transform_indices = @transform_8, window_bounds = array<i64: 128, 128>}, {pipeline_mode = #tpu.pipeline_mode<synchronous>, transform_indices = @transform_9, window_bounds = array<i64: 128, 1>}, {pipeline_mode = #tpu.pipeline_mode<synchronous>, transform_indices = @transform_10, window_bounds = array<i64: 8, 128>}, {pipeline_mode = #tpu.pipeline_mode<synchronous>, transform_indices = @transform_11, window_bounds = array<i64: 8, 128>}, {pipeline_mode = #tpu.pipeline_mode<synchronous>, transform_indices = @transform_12, window_bounds = array<i64: 128, 128>}, {pipeline_mode = #tpu.pipeline_mode<synchronous>, transform_indices = @transform_13, window_bounds = array<i64: 128, 128>}, {pipeline_mode = #tpu.pipeline_mode<synchronous>, transform_indices = @transform_14, window_bounds = array<i64: 128, 1>}]} {
    %c0_i32 = arith.constant 0 : i32
    %0 = arith.cmpi eq, %arg0, %c0_i32 : i32
    %1 = arith.extui %0 : i1 to i32
    %c0_i32_0 = arith.constant 0 : i32
    %2 = arith.cmpi ne, %1, %c0_i32_0 : i32
    scf.if %2 {
      %cst_9 = arith.constant 0.000000e+00 : f32
      %12 = vector.broadcast %cst_9 : f32 to vector<8x128xf32>
      %c0_10 = arith.constant 0 : index
      %c0_11 = arith.constant 0 : index
      %13 = vector.load %arg16[%c0_10, %c0_11] : memref<8x128xf32, #tpu.memory_space<vmem>>, vector<8x128xf32>
      tpu.vector_store %arg16[%c0_10, %c0_11], %12 {strides = array<i32>} : memref<8x128xf32, #tpu.memory_space<vmem>>, vector<8x128xf32>,
    } else {
    }
    %c0 = arith.constant 0 : index
    %c0_1 = arith.constant 0 : index
    %3 = vector.load %arg16[%c0, %c0_1] : memref<8x128xf32, #tpu.memory_space<vmem>>, vector<8x128xf32>
    %c0_2 = arith.constant 0 : index
    %c0_3 = arith.constant 0 : index
    %4 = vector.load %arg2[%c0_2, %c0_3] : memref<8x256xbf16, #tpu.memory_space<vmem>>, vector<8x256xbf16>
    %c0_4 = arith.constant 0 : index
    %c0_5 = arith.constant 0 : index
    %5 = vector.load %arg3[%c0_4, %c0_5] : memref<256x128xbf16, #tpu.memory_space<vmem>>, vector<256x128xbf16>
    %cst = arith.constant dense<0.000000e+00> : vector<8x128xf32>
    %6 = tpu.matmul %4, %5, %cst {dimension_numbers = #tpu.dot_dimension_numbers<[1], [0], [0], [1], [0, 0, 1, 1], [], []>} : vector<8x256xbf16>, vector<256x128xbf16>, vector<8x128xf32> -> vector<8x128xf32>
    %7 = arith.addf %3, %6 : vector<8x128xf32>
    %c0_6 = arith.constant 0 : index
    %c0_7 = arith.constant 0 : index
    %8 = vector.load %arg16[%c0_6, %c0_7] : memref<8x128xf32, #tpu.memory_space<vmem>>, vector<8x128xf32>
    tpu.vector_store %arg16[%c0_6, %c0_7], %7 {strides = array<i32>} : memref<8x128xf32, #tpu.memory_space<vmem>>, vector<8x128xf32>,
    %c3_i32 = arith.constant 3 : i32
    %9 = arith.cmpi eq, %arg0, %c3_i32 : i32
    %10 = arith.extui %9 : i1 to i32
    %c0_i32_8 = arith.constant 0 : i32
    %11 = arith.cmpi ne, %10, %c0_i32_8 : i32
    scf.if %11 {
      %c0_9 = arith.constant 0 : index
      %c0_10 = arith.constant 0 : index
      %12 = vector.load %arg16[%c0_9, %c0_10] : memref<8x128xf32, #tpu.memory_space<vmem>>, vector<8x128xf32>
      %c0_11 = arith.constant 0 : index
      %c0_12 = arith.constant 0 : index
      %13 = vector.load %arg4[%c0_11, %c0_12] : memref<1x128xf32, #tpu.memory_space<vmem>>, vector<1x128xf32>
      %14 = vector.broadcast %13 : vector<1x128xf32> to vector<8x128xf32>
      %15 = arith.addf %12, %14 : vector<8x128xf32>
      %c0_13 = arith.constant 0 : index
      %c0_14 = arith.constant 0 : index
      %16 = vector.load %arg5[%c0_13, %c0_14] : memref<128x128xf32, #tpu.memory_space<vmem>>, vector<128x128xf32>
      %c0_15 = arith.constant 0 : index
      %c0_16 = arith.constant 0 : index
      %17 = vector.load %arg7[%c0_15, %c0_16] : memref<8x128xf32, #tpu.memory_space<vmem>>, vector<8x128xf32>
      %c0_17 = arith.constant 0 : index
      %c0_18 = arith.constant 0 : index
      %18 = vector.load %arg8[%c0_17, %c0_18] : memref<128x128xf32, #tpu.memory_space<vmem>>, vector<128x128xf32>
      %c0_19 = arith.constant 0 : index
      %c0_20 = arith.constant 0 : index
      %19 = vector.load %arg9[%c0_19, %c0_20] : memref<128x128xf32, #tpu.memory_space<vmem>>, vector<128x128xf32>
      %c0_21 = arith.constant 0 : index
      %c0_22 = arith.constant 0 : index
      %20 = vector.load %arg10[%c0_21, %c0_22] : memref<128x1xf32, #tpu.memory_space<vmem>>, vector<128x1xf32>
      %c0_23 = arith.constant 0 : index
      %21 = memref.load %arg1[%c0_23] : memref<1xf32, #tpu.memory_space<smem>>
      %cst_24 = arith.constant dense<0.000000e+00> : vector<8x128xf32>
      %22 = tpu.matmul %15, %16, %cst_24 {dimension_numbers = #tpu.dot_dimension_numbers<[1], [1], [0], [0], [0, 0, 1, 0], [], []>} : vector<8x128xf32>, vector<128x128xf32>, vector<8x128xf32> -> vector<8x128xf32>
      %c0_25 = arith.constant 0 : index
      %c0_26 = arith.constant 0 : index
      %23 = vector.load %arg6[%c0_25, %c0_26] : memref<1x128xf32, #tpu.memory_space<vmem>>, vector<1x128xf32>
      %24 = vector.broadcast %23 : vector<1x128xf32> to vector<8x128xf32>
      %25 = arith.addf %22, %24 : vector<8x128xf32>
      %c0_27 = arith.constant 0 : index
      %c0_28 = arith.constant 0 : index
      %26 = vector.load %arg12[%c0_27, %c0_28] : memref<8x128xf32, #tpu.memory_space<vmem>>, vector<8x128xf32>
      tpu.vector_store %arg12[%c0_27, %c0_28], %25 {strides = array<i32>} : memref<8x128xf32, #tpu.memory_space<vmem>>, vector<8x128xf32>,
      %cst_29 = arith.constant 1.000000e+00 : f32
      %27 = vector.broadcast %cst_29 : f32 to vector<8x1xf32>
      %cst_30 = arith.constant dense<0.000000e+00> : vector<128x1xf32>
      %28 = tpu.matmul %17, %27, %cst_30 {dimension_numbers = #tpu.dot_dimension_numbers<[0], [0], [1], [1], [0, 1, 1, 1], [], []>} : vector<8x128xf32>, vector<8x1xf32>, vector<128x1xf32> -> vector<128x1xf32>
      %cst_31 = arith.constant dense<0.000000e+00> : vector<128x128xf32>
      %29 = tpu.matmul %17, %15, %cst_31 {dimension_numbers = #tpu.dot_dimension_numbers<[0], [0], [1], [1], [0, 1, 1, 1], [], []>} : vector<8x128xf32>, vector<8x128xf32>, vector<128x128xf32> -> vector<128x128xf32>
      %30 = arith.mulf %15, %15 : vector<8x128xf32>
      %cst_32 = arith.constant dense<0.000000e+00> : vector<128x128xf32>
      %31 = tpu.matmul %17, %30, %cst_32 {dimension_numbers = #tpu.dot_dimension_numbers<[0], [0], [1], [1], [0, 1, 1, 1], [], []>} : vector<8x128xf32>, vector<8x128xf32>, vector<128x128xf32> -> vector<128x128xf32>
      %cst_33 = arith.constant 0.000000e+00 : f32
      %32 = vector.broadcast %cst_33 : f32 to vector<128x1xf32>
      %33 = arith.cmpf oeq, %28, %32 : vector<128x1xf32>
      %cst_34 = arith.constant 1.000000e+00 : f32
      %34 = vector.broadcast %cst_34 : f32 to vector<128x1xf32>
      %35 = arith.select %33, %34, %28 : vector<128x1xi1>, vector<128x1xf32>
      %36 = vector.broadcast %35 : vector<128x1xf32> to vector<128x128xf32>
      %37 = arith.divf %29, %36 : vector<128x128xf32>
      %cst_35 = arith.constant 2.000000e+00 : f32
      %38 = vector.broadcast %cst_35 : f32 to vector<128x128xf32>
      %39 = arith.mulf %38, %37 : vector<128x128xf32>
      %40 = arith.mulf %39, %29 : vector<128x128xf32>
      %41 = arith.subf %31, %40 : vector<128x128xf32>
      %42 = vector.broadcast %28 : vector<128x1xf32> to vector<128x128xf32>
      %43 = arith.mulf %42, %37 : vector<128x128xf32>
      %44 = arith.mulf %43, %37 : vector<128x128xf32>
      %45 = arith.addf %41, %44 : vector<128x128xf32>
      %46 = vector.broadcast %35 : vector<128x1xf32> to vector<128x128xf32>
      %47 = arith.divf %45, %46 : vector<128x128xf32>
      %48 = arith.addf %28, %20 : vector<128x1xf32>
      %cst_36 = arith.constant 0.000000e+00 : f32
      %49 = vector.broadcast %cst_36 : f32 to vector<128x1xf32>
      %50 = arith.cmpf oeq, %48, %49 : vector<128x1xf32>
      %cst_37 = arith.constant 0.000000e+00 : f32
      %51 = vector.broadcast %cst_37 : f32 to vector<128x1xf32>
      %52 = arith.cmpf oeq, %48, %51 : vector<128x1xf32>
      %cst_38 = arith.constant 1.000000e+00 : f32
      %53 = vector.broadcast %cst_38 : f32 to vector<128x1xf32>
      %54 = arith.select %52, %53, %48 : vector<128x1xi1>, vector<128x1xf32>
      %55 = arith.divf %28, %54 : vector<128x1xf32>
      %cst_39 = arith.constant 0.000000e+00 : f32
      %56 = vector.broadcast %cst_39 : f32 to vector<128x1xf32>
      %57 = arith.select %50, %56, %55 : vector<128x1xi1>, vector<128x1xf32>
      %cst_40 = arith.constant 1.000000e+00 : f32
      %58 = vector.broadcast %cst_40 : f32 to vector<128x1xf32>
      %59 = arith.subf %58, %57 : vector<128x1xf32>
      %60 = vector.broadcast %59 : vector<128x1xf32> to vector<128x128xf32>
      %61 = arith.mulf %19, %60 : vector<128x128xf32>
      %62 = vector.broadcast %57 : vector<128x1xf32> to vector<128x128xf32>
      %63 = arith.mulf %47, %62 : vector<128x128xf32>
      %64 = arith.addf %61, %63 : vector<128x128xf32>
      %cst_41 = arith.constant 1.000000e+00 : f32
      %65 = vector.broadcast %cst_41 : f32 to vector<128x1xf32>
      %66 = arith.subf %65, %57 : vector<128x1xf32>
      %67 = arith.mulf %57, %66 : vector<128x1xf32>
      %68 = arith.subf %18, %37 : vector<128x128xf32>
      %69 = arith.mulf %68, %68 : vector<128x128xf32>
      %70 = vector.broadcast %67 : vector<128x1xf32> to vector<128x128xf32>
      %71 = arith.mulf %70, %69 : vector<128x128xf32>
      %72 = arith.addf %64, %71 : vector<128x128xf32>
      %c0_42 = arith.constant 0 : index
      %c0_43 = arith.constant 0 : index
      %73 = vector.load %arg13[%c0_42, %c0_43] : memref<128x128xf32, #tpu.memory_space<vmem>>, vector<128x128xf32>
      tpu.vector_store %arg13[%c0_42, %c0_43], %72 {strides = array<i32>} : memref<128x128xf32, #tpu.memory_space<vmem>>, vector<128x128xf32>,
      %cst_44 = arith.constant 1.000000e+00 : f32
      %74 = vector.broadcast %cst_44 : f32 to vector<128x1xf32>
      %75 = arith.subf %74, %57 : vector<128x1xf32>
      %76 = vector.broadcast %75 : vector<128x1xf32> to vector<128x128xf32>
      %77 = arith.mulf %18, %76 : vector<128x128xf32>
      %78 = vector.broadcast %57 : vector<128x1xf32> to vector<128x128xf32>
      %79 = arith.mulf %37, %78 : vector<128x128xf32>
      %80 = arith.addf %77, %79 : vector<128x128xf32>
      %c0_45 = arith.constant 0 : index
      %c0_46 = arith.constant 0 : index
      %81 = vector.load %arg14[%c0_45, %c0_46] : memref<128x128xf32, #tpu.memory_space<vmem>>, vector<128x128xf32>
      tpu.vector_store %arg14[%c0_45, %c0_46], %80 {strides = array<i32>} : memref<128x128xf32, #tpu.memory_space<vmem>>, vector<128x128xf32>,
      %82 = arith.addf %20, %28 : vector<128x1xf32>
      %c0_47 = arith.constant 0 : index
      %c0_48 = arith.constant 0 : index
      %83 = vector.load %arg15[%c0_47, %c0_48] : memref<128x1xf32, #tpu.memory_space<vmem>>, vector<128x1xf32>
      tpu.vector_store %arg15[%c0_47, %c0_48], %82 {strides = array<i32>} : memref<128x1xf32, #tpu.memory_space<vmem>>, vector<128x1xf32>,
      %cst_49 = arith.constant dense<0.000000e+00> : vector<8x128xf32>
      %84 = tpu.matmul %17, %16, %cst_49 {dimension_numbers = #tpu.dot_dimension_numbers<[1], [0], [0], [1], [0, 0, 1, 1], [], []>} : vector<8x128xf32>, vector<128x128xf32>, vector<8x128xf32> -> vector<8x128xf32>
      %cst_50 = arith.constant dense<0.000000e+00> : vector<8x128xf32>
      %85 = tpu.matmul %17, %72, %cst_50 {dimension_numbers = #tpu.dot_dimension_numbers<[1], [0], [0], [1], [0, 0, 1, 1], [], []>} : vector<8x128xf32>, vector<128x128xf32>, vector<8x128xf32> -> vector<8x128xf32>
      %86 = arith.mulf %16, %16 : vector<128x128xf32>
      %cst_51 = arith.constant dense<0.000000e+00> : vector<8x128xf32>
      %87 = tpu.matmul %85, %86, %cst_51 {dimension_numbers = #tpu.dot_dimension_numbers<[1], [1], [0], [0], [0, 0, 1, 0], [], []>} : vector<8x128xf32>, vector<128x128xf32>, vector<8x128xf32> -> vector<8x128xf32>
      %88 = arith.mulf %84, %85 : vector<8x128xf32>
      %cst_52 = arith.constant dense<0.000000e+00> : vector<8x128xf32>
      %89 = tpu.matmul %88, %16, %cst_52 {dimension_numbers = #tpu.dot_dimension_numbers<[1], [1], [0], [0], [0, 0, 1, 0], [], []>} : vector<8x128xf32>, vector<128x128xf32>, vector<8x128xf32> -> vector<8x128xf32>
      %90 = arith.mulf %84, %84 : vector<8x128xf32>
      %91 = arith.mulf %90, %85 : vector<8x128xf32>
      %cst_53 = arith.constant dense<0.000000e+00> : vector<8xf32>
      %92 = vector.multi_reduction <add>, %91, %cst_53 [1] : vector<8x128xf32> to vector<8xf32>
      %93 = vector.shape_cast %92 : vector<8xf32> to vector<8x1xf32>
      %cst_54 = arith.constant 2.000000e+00 : f32
      %94 = vector.broadcast %cst_54 : f32 to vector<8x128xf32>
      %95 = arith.mulf %94, %89 : vector<8x128xf32>
      %96 = arith.subf %87, %95 : vector<8x128xf32>
      %97 = vector.broadcast %93 : vector<8x1xf32> to vector<8x128xf32>
      %98 = arith.addf %96, %97 : vector<8x128xf32>
      %99 = vector.broadcast %21 : f32 to vector<8x128xf32>
      %100 = arith.mulf %99, %98 : vector<8x128xf32>
      %cst_55 = arith.constant 5.000000e-01 : f32
      %101 = vector.broadcast %cst_55 : f32 to vector<8x128xf32>
      %102 = arith.mulf %101, %100 : vector<8x128xf32>
      %103 = arith.addf %25, %102 : vector<8x128xf32>
      %c0_56 = arith.constant 0 : index
      %c0_57 = arith.constant 0 : index
      %104 = vector.load %arg11[%c0_56, %c0_57] : memref<8x128xf32, #tpu.memory_space<vmem>>, vector<8x128xf32>
      tpu.vector_store %arg11[%c0_56, %c0_57], %103 {strides = array<i32>} : memref<8x128xf32, #tpu.memory_space<vmem>>, vector<8x128xf32>,
    } else {
    }
    return
  }
  func.func @transform_0(%arg0: i32) -> i32 {
    %c0_i32 = arith.constant 0 : i32
    %c0_i32_0 = arith.constant 0 : i32
    return %c0_i32 : i32
  }
  func.func @transform_1(%arg0: i32) -> (i32, i32) {
    %c0_i32 = arith.constant 0 : i32
    %c0_i32_0 = arith.constant 0 : i32
    return %c0_i32, %arg0 : i32, i32
  }
  func.func @transform_2(%arg0: i32) -> (i32, i32) {
    %c0_i32 = arith.constant 0 : i32
    %c0_i32_0 = arith.constant 0 : i32
    return %arg0, %c0_i32 : i32, i32
  }
  func.func @transform_3(%arg0: i32) -> (i32, i32) {
    %c0_i32 = arith.constant 0 : i32
    %c0_i32_0 = arith.constant 0 : i32
    %c0_i32_1 = arith.constant 0 : i32
    return %c0_i32, %c0_i32_0 : i32, i32
  }
  func.func @transform_4(%arg0: i32) -> (i32, i32) {
    %c0_i32 = arith.constant 0 : i32
    %c0_i32_0 = arith.constant 0 : i32
    %c0_i32_1 = arith.constant 0 : i32
    return %c0_i32, %c0_i32_0 : i32, i32
  }
  func.func @transform_5(%arg0: i32) -> (i32, i32) {
    %c0_i32 = arith.constant 0 : i32
    %c0_i32_0 = arith.constant 0 : i32
    %c0_i32_1 = arith.constant 0 : i32
    return %c0_i32, %c0_i32_0 : i32, i32
  }
  func.func @transform_6(%arg0: i32) -> (i32, i32) {
    %c0_i32 = arith.constant 0 : i32
    %c0_i32_0 = arith.constant 0 : i32
    %c0_i32_1 = arith.constant 0 : i32
    return %c0_i32, %c0_i32_0 : i32, i32
  }
  func.func @transform_7(%arg0: i32) -> (i32, i32) {
    %c0_i32 = arith.constant 0 : i32
    %c0_i32_0 = arith.constant 0 : i32
    %c0_i32_1 = arith.constant 0 : i32
    return %c0_i32, %c0_i32_0 : i32, i32
  }
  func.func @transform_8(%arg0: i32) -> (i32, i32) {
    %c0_i32 = arith.constant 0 : i32
    %c0_i32_0 = arith.constant 0 : i32
    %c0_i32_1 = arith.constant 0 : i32
    return %c0_i32, %c0_i32_0 : i32, i32
  }
  func.func @transform_9(%arg0: i32) -> (i32, i32) {
    %c0_i32 = arith.constant 0 : i32
    %c0_i32_0 = arith.constant 0 : i32
    %c0_i32_1 = arith.constant 0 : i32
    return %c0_i32, %c0_i32_0 : i32, i32
  }
  func.func @transform_10(%arg0: i32) -> (i32, i32) {
    %c0_i32 = arith.constant 0 : i32
    %c0_i32_0 = arith.constant 0 : i32
    %c0_i32_1 = arith.constant 0 : i32
    return %c0_i32, %c0_i32_0 : i32, i32
  }
  func.func @transform_11(%arg0: i32) -> (i32, i32) {
    %c0_i32 = arith.constant 0 : i32
    %c0_i32_0 = arith.constant 0 : i32
    %c0_i32_1 = arith.constant 0 : i32
    return %c0_i32, %c0_i32_0 : i32, i32
  }
  func.func @transform_12(%arg0: i32) -> (i32, i32) {
    %c0_i32 = arith.constant 0 : i32
    %c0_i32_0 = arith.constant 0 : i32
    %c0_i32_1 = arith.constant 0 : i32
    return %c0_i32, %c0_i32_0 : i32, i32
  }
  func.func @transform_13(%arg0: i32) -> (i32, i32) {
    %c0_i32 = arith.constant 0 : i32
    %c0_i32_0 = arith.constant 0 : i32
    %c0_i32_1 = arith.constant 0 : i32
    return %c0_i32, %c0_i32_0 : i32, i32
  }
  func.func @transform_14(%arg0: i32) -> (i32, i32) {
    %c0_i32 = arith.constant 0 : i32
    %c0_i32_0 = arith.constant 0 : i32
    %c0_i32_1 = arith.constant 0 : i32
    return %c0_i32, %c0_i32_0 : i32, i32
  }
}

</mosaic_0001>

<llo_original>
// kernel: _fused_forward.1
$region0: #{_fused_forward.1}
  #allocation0 [shape = 'u32[]', space=smem, size = 0x4, offset = 0x4, fixed_abs, tag = 'smem constant byte address 0x4 - core index']
  #allocation1 [shape = 'u32[144,128]{1,0:T(1,128)}', space=vmem, size = 0x12000, scoped, tag = 'internal scratch']
  #allocation2 [shape = 'f32[8,128]{1,0:T(8,128)}', space=vmem, size = 0x1000, scoped, tag = 'scratch operand']
  #allocation3 [shape = 'f32[1]{0:T(128)S(6)}', space=smem, size = 0x200, scoped, tag = 'scoped memory for _fused_forward.1']
  %s0 = inlined_call_operand.<no memory space> [shape: f32[1], index: 0, kind: input, shape index: {}]
  %s1 = inlined_call_operand.hbm [shape: bf16[8,1024], index: 1, kind: input, shape index: {}]
  %s2 = inlined_call_operand.hbm [shape: bf16[1024,128], index: 2, kind: input, shape index: {}]
  %s3 = inlined_call_operand.hbm [shape: f32[1,128], index: 3, kind: input, shape index: {}]
  %s4 = inlined_call_operand.vmem [shape: f32[128,128], index: 4, kind: input, shape index: {}]
  %s5 = inlined_call_operand.vmem [shape: f32[1,128], index: 5, kind: input, shape index: {}]
  %s6 = inlined_call_operand.vmem [shape: f32[8,128], index: 6, kind: input, shape index: {}]
  %s7 = inlined_call_operand.vmem [shape: f32[128,128], index: 7, kind: input, shape index: {}, may-alias: {7,13}]
  %s8 = inlined_call_operand.vmem [shape: f32[128,128], index: 8, kind: input, shape index: {}, may-alias: {8,12}]
  %s9 = inlined_call_operand.vmem [shape: f32[128,1], index: 9, kind: input, shape index: {}, may-alias: {9,14}]
  %s10 = inlined_call_operand.hbm [shape: f32[8,128], index: 10, kind: output, shape index: {0}]
  %s11 = inlined_call_operand.hbm [shape: f32[8,128], index: 11, kind: output, shape index: {1}]
  %s12 = inlined_call_operand.vmem [shape: f32[128,128], index: 12, kind: output, shape index: {2}, may-alias: {8,12}]
  %s13 = inlined_call_operand.vmem [shape: f32[128,128], index: 13, kind: output, shape index: {3}, may-alias: {7,13}]
  %s14 = inlined_call_operand.vmem [shape: f32[128,1], index: 14, kind: output, shape index: {4}, may-alias: {9,14}]
  %15 = xla_tuple %s10, %s11, %s12, %s13, %s14
  %s16 = sld [smem:[#allocation0]]
  $region125: #{_fused_forward.1} parent=0
    _
  %s18 = ssub.s32 1, %s16
  %s19 = scalar_select 0, %s18, %s16
  %20 = sst [smem:[#allocation3]] %s0
  $region1: #{_fused_forward.1} parent=0
    #allocation4 [shape = 'u8[8192]{0}', space=vmem, size = 0x2000, scoped, tag = 'input window, operand 1']
    #allocation5 [shape = 's32[2]{0}', space=sflag, size = 0x8, scoped, tag = 'scoped memory for _fused_forward.1']
    #allocation6 [shape = 's32[2]{0}', space=sflag, size = 0x8, scoped, tag = 'scoped memory for _fused_forward.1']
    #allocation7 [shape = 'u8[131072]{0}', space=vmem, size = 0x20000, scoped, tag = 'input window, operand 2']
    #allocation8 [shape = 's32[2]{0}', space=sflag, size = 0x8, scoped, tag = 'scoped memory for _fused_forward.1']
    #allocation9 [shape = 'u8[512]{0}', space=vmem, size = 0x400, scoped, tag = 'input window, operand 3, single buffered']
    #allocation10 [shape = 'u8[4096]{0}', space=vmem, size = 0x1000, scoped, tag = 'output window, operand 0, single buffered']
    #allocation11 [shape = 'u8[4096]{0}', space=vmem, size = 0x1000, scoped, tag = 'output window, operand 1, single buffered']
    #allocation12 [shape = 's32[1]{0}', space=sflag, size = 0x4, scoped, tag = 'scoped memory for _fused_forward.1']
    %21 = vsyncpa [#allocation5], 0
    %s22 = scalar_lea.sflag [#allocation5], 1
    %23 = vsyncpa %s22, 0
    %24 = vsyncpa [#allocation8], 0
    %s25 = scalar_lea.sflag [#allocation8], 1
    %26 = vsyncpa %s25, 0
    %27 = vsyncpa [#allocation6], 0
    %28 = vsyncpa [#allocation12], 0
    loop: start=0, step=1, limit=6
    $region2: #{_fused_forward.1} parent=1 // loop_pre_header
      _
    $region3: #{_fused_forward.1} parent=1 // loop_header
      %s30 = sphi 0, %s34
      %p31 = scmp.ge.s32.totalorder %s30, 6
      %s38 = sphi 0, %s38
      %s40 = sphi 0, %s38
      %s41 = sphi 0, %s40
      %s55 = sphi 0, %s41
      %s61 = sphi 0, %s63
      %s64 = sphi 0, %s61
      %s65 = sphi 0, %s64
      %s81 = sphi 0, %s65
      %s87 = sphi 0, %s89
      %s90 = sphi 0, %s87
      %s91 = sphi 0, %s90
      %s107 = sphi 0, %s91
      %s111 = sphi 0, %s111
      %s113 = sphi 0, %s111
      %s114 = sphi 0, %s113
      %s128 = sphi 0, %s114
      %s132 = sphi 0, %s132
      %s134 = sphi 0, %s132
      %s135 = sphi 0, %s134
      %s149 = sphi 0, %s135
      %s153 = sphi 0, %s153
      %s155 = sphi 0, %s153
      %s156 = sphi 0, %s155
      %s170 = sphi 0, %s156
      %s174 = sphi 0, %s174
      %s176 = sphi 0, %s174
      %s177 = sphi 0, %s176
      %s191 = sphi 0, %s177
      %s195 = sphi 0, %s195
      %s197 = sphi 0, %s195
      %s198 = sphi 0, %s197
      %s212 = sphi 0, %s198
      %s216 = sphi 0, %s216
      %s218 = sphi 0, %s216
      %s219 = sphi 0, %s218
      %s233 = sphi 0, %s219
      %s237 = sphi 0, %s237
      %s239 = sphi 0, %s237
      %s240 = sphi 0, %s239
      %s254 = sphi 0, %s240
      %s258 = sphi 0, %s258
      %s260 = sphi 0, %s258
      %s261 = sphi 0, %s260
      %s275 = sphi 0, %s261
      %s279 = sphi 0, %s279
      %s281 = sphi 0, %s279
      %s282 = sphi 0, %s281
      %s296 = sphi 0, %s282
      %s300 = sphi 0, %s300
      %s302 = sphi 0, %s300
      %s303 = sphi 0, %s302
      %s317 = sphi 0, %s303
      %s321 = sphi 0, %s321
      %s323 = sphi 0, %s321
      %s324 = sphi 0, %s323
      %s338 = sphi 0, %s324
      %s342 = sphi 0, %s342
      %s344 = sphi 0, %s342
      %s345 = sphi 0, %s344
      %s359 = sphi 0, %s345
    $region4: #{_fused_forward.1} parent=1 // loop_header_branch
      %33 = sbr.rel (%p31) target = $region8
    $region5: #{_fused_forward.1} parent=1 // loop_body
      %s35 = ssub.s32 %s30, 1
      %s36 = ssub.s32 %s30, 2
      %s37 = sadd.s32 %s30, 1
      %s39 = sadd.s32 %s38, 1
      %p42 = scmp.eq.s32.totalorder %s30, 3
      %p43 = scmp.ne.s32.totalorder %s38, %s40
      %p44 = scmp.eq.s32.totalorder %s30, 0
      %p45 = por %p43, %p44
      %p46 = scmp.ne.s32.totalorder %s38, %s40
      %p47 = scmp.eq.s32.totalorder %s35, 3
      %p48 = por %p46, %p47
      %p49 = scmp.ne.s32.totalorder %s40, %s41
      %p50 = scmp.eq.s32.totalorder %s35, 0
      %p51 = por %p49, %p50
      %p52 = scmp.ne.s32.totalorder %s40, %s41
      %p53 = scmp.eq.s32.totalorder %s36, 3
      %p54 = por %p52, %p53
      %p56 = scmp.ne.s32.totalorder %s41, %s55
      %p57 = scmp.eq.s32.totalorder %s36, 0
      %p58 = por %p56, %p57
      %s59 = ssub.s32 %s30, %s37
      %p60 = scmp.eq.s32.totalorder %s59, 0
      %s62 = sadd.s32 %s61, 1
      %s63 = scalar_select %p60, %s61, %s62
      %p66 = pneg %p60
      %p67 = scmp.eq.s32.totalorder %s30, 3
      %p68 = por %p66, %p67
      %p69 = scmp.ne.s32.totalorder %s61, %s64
      %p70 = scmp.eq.s32.totalorder %s30, 0
      %p71 = por %p69, %p70
      %p72 = scmp.ne.s32.totalorder %s61, %s64
      %p73 = scmp.eq.s32.totalorder %s35, 3
      %p74 = por %p72, %p73
      %p75 = scmp.ne.s32.totalorder %s64, %s65
      %p76 = scmp.eq.s32.totalorder %s35, 0
      %p77 = por %p75, %p76
      %p78 = scmp.ne.s32.totalorder %s64, %s65
      %p79 = scmp.eq.s32.totalorder %s36, 3
      %p80 = por %p78, %p79
      %p82 = scmp.ne.s32.totalorder %s65, %s81
      %p83 = scmp.eq.s32.totalorder %s36, 0
      %p84 = por %p82, %p83
      %s85 = ssub.s32 %s30, %s37
      %p86 = scmp.eq.s32.totalorder %s85, 0
      %s88 = sadd.s32 %s87, 1
      %s89 = scalar_select %p86, %s87, %s88
      %p92 = pneg %p86
      %p93 = scmp.eq.s32.totalorder %s30, 3
      %p94 = por %p92, %p93
      %p95 = scmp.ne.s32.totalorder %s87, %s90
      %p96 = scmp.eq.s32.totalorder %s30, 0
      %p97 = por %p95, %p96
      %p98 = scmp.ne.s32.totalorder %s87, %s90
      %p99 = scmp.eq.s32.totalorder %s35, 3
      %p100 = por %p98, %p99
      %p101 = scmp.ne.s32.totalorder %s90, %s91
      %p102 = scmp.eq.s32.totalorder %s35, 0
      %p103 = por %p101, %p102
      %p104 = scmp.ne.s32.totalorder %s90, %s91
      %p105 = scmp.eq.s32.totalorder %s36, 3
      %p106 = por %p104, %p105
      %p108 = scmp.ne.s32.totalorder %s91, %s107
      %p109 = scmp.eq.s32.totalorder %s36, 0
      %p110 = por %p108, %p109
      %s112 = sadd.s32 %s111, 1
      %p115 = scmp.eq.s32.totalorder %s30, 3
      %p116 = scmp.ne.s32.totalorder %s111, %s113
      %p117 = scmp.eq.s32.totalorder %s30, 0
      %p118 = por %p116, %p117
      %p119 = scmp.ne.s32.totalorder %s111, %s113
      %p120 = scmp.eq.s32.totalorder %s35, 3
      %p121 = por %p119, %p120
      %p122 = scmp.ne.s32.totalorder %s113, %s114
      %p123 = scmp.eq.s32.totalorder %s35, 0
      %p124 = por %p122, %p123
      %p125 = scmp.ne.s32.totalorder %s113, %s114
      %p126 = scmp.eq.s32.totalorder %s36, 3
      %p127 = por %p125, %p126
      %p129 = scmp.ne.s32.totalorder %s114, %s128
      %p130 = scmp.eq.s32.totalorder %s36, 0
      %p131 = por %p129, %p130
      %s133 = sadd.s32 %s132, 1
      %p136 = scmp.eq.s32.totalorder %s30, 3
      %p137 = scmp.ne.s32.totalorder %s132, %s134
      %p138 = scmp.eq.s32.totalorder %s30, 0
      %p139 = por %p137, %p138
      %p140 = scmp.ne.s32.totalorder %s132, %s134
      %p141 = scmp.eq.s32.totalorder %s35, 3
      %p142 = por %p140, %p141
      %p143 = scmp.ne.s32.totalorder %s134, %s135
      %p144 = scmp.eq.s32.totalorder %s35, 0
      %p145 = por %p143, %p144
      %p146 = scmp.ne.s32.totalorder %s134, %s135
      %p147 = scmp.eq.s32.totalorder %s36, 3
      %p148 = por %p146, %p147
      %p150 = scmp.ne.s32.totalorder %s135, %s149
      %p151 = scmp.eq.s32.totalorder %s36, 0
      %p152 = por %p150, %p151
      %s154 = sadd.s32 %s153, 1
      %p157 = scmp.eq.s32.totalorder %s30, 3
      %p158 = scmp.ne.s32.totalorder %s153, %s155
      %p159 = scmp.eq.s32.totalorder %s30, 0
      %p160 = por %p158, %p159
      %p161 = scmp.ne.s32.totalorder %s153, %s155
      %p162 = scmp.eq.s32.totalorder %s35, 3
      %p163 = por %p161, %p162
      %p164 = scmp.ne.s32.totalorder %s155, %s156
      %p165 = scmp.eq.s32.totalorder %s35, 0
      %p166 = por %p164, %p165
      %p167 = scmp.ne.s32.totalorder %s155, %s156
      %p168 = scmp.eq.s32.totalorder %s36, 3
      %p169 = por %p167, %p168
      %p171 = scmp.ne.s32.totalorder %s156, %s170
      %p172 = scmp.eq.s32.totalorder %s36, 0
      %p173 = por %p171, %p172
      %s175 = sadd.s32 %s174, 1
      %p178 = scmp.eq.s32.totalorder %s30, 3
      %p179 = scmp.ne.s32.totalorder %s174, %s176
      %p180 = scmp.eq.s32.totalorder %s30, 0
      %p181 = por %p179, %p180
      %p182 = scmp.ne.s32.totalorder %s174, %s176
      %p183 = scmp.eq.s32.totalorder %s35, 3
      %p184 = por %p182, %p183
      %p185 = scmp.ne.s32.totalorder %s176, %s177
      %p186 = scmp.eq.s32.totalorder %s35, 0
      %p187 = por %p185, %p186
      %p188 = scmp.ne.s32.totalorder %s176, %s177
      %p189 = scmp.eq.s32.totalorder %s36, 3
      %p190 = por %p188, %p189
      %p192 = scmp.ne.s32.totalorder %s177, %s191
      %p193 = scmp.eq.s32.totalorder %s36, 0
      %p194 = por %p192, %p193
      %s196 = sadd.s32 %s195, 1
      %p199 = scmp.eq.s32.totalorder %s30, 3
      %p200 = scmp.ne.s32.totalorder %s195, %s197
      %p201 = scmp.eq.s32.totalorder %s30, 0
      %p202 = por %p200, %p201
      %p203 = scmp.ne.s32.totalorder %s195, %s197
      %p204 = scmp.eq.s32.totalorder %s35, 3
      %p205 = por %p203, %p204
      %p206 = scmp.ne.s32.totalorder %s197, %s198
      %p207 = scmp.eq.s32.totalorder %s35, 0
      %p208 = por %p206, %p207
      %p209 = scmp.ne.s32.totalorder %s197, %s198
      %p210 = scmp.eq.s32.totalorder %s36, 3
      %p211 = por %p209, %p210
      %p213 = scmp.ne.s32.totalorder %s198, %s212
      %p214 = scmp.eq.s32.totalorder %s36, 0
      %p215 = por %p213, %p214
      %s217 = sadd.s32 %s216, 1
      %p220 = scmp.eq.s32.totalorder %s30, 3
      %p221 = scmp.ne.s32.totalorder %s216, %s218
      %p222 = scmp.eq.s32.totalorder %s30, 0
      %p223 = por %p221, %p222
      %p224 = scmp.ne.s32.totalorder %s216, %s218
      %p225 = scmp.eq.s32.totalorder %s35, 3
      %p226 = por %p224, %p225
      %p227 = scmp.ne.s32.totalorder %s218, %s219
      %p228 = scmp.eq.s32.totalorder %s35, 0
      %p229 = por %p227, %p228
      %p230 = scmp.ne.s32.totalorder %s218, %s219
      %p231 = scmp.eq.s32.totalorder %s36, 3
      %p232 = por %p230, %p231
      %p234 = scmp.ne.s32.totalorder %s219, %s233
      %p235 = scmp.eq.s32.totalorder %s36, 0
      %p236 = por %p234, %p235
      %s238 = sadd.s32 %s237, 1
      %p241 = scmp.eq.s32.totalorder %s30, 3
      %p242 = scmp.ne.s32.totalorder %s237, %s239
      %p243 = scmp.eq.s32.totalorder %s30, 0
      %p244 = por %p242, %p243
      %p245 = scmp.ne.s32.totalorder %s237, %s239
      %p246 = scmp.eq.s32.totalorder %s35, 3
      %p247 = por %p245, %p246
      %p248 = scmp.ne.s32.totalorder %s239, %s240
      %p249 = scmp.eq.s32.totalorder %s35, 0
      %p250 = por %p248, %p249
      %p251 = scmp.ne.s32.totalorder %s239, %s240
      %p252 = scmp.eq.s32.totalorder %s36, 3
      %p253 = por %p251, %p252
      %p255 = scmp.ne.s32.totalorder %s240, %s254
      %p256 = scmp.eq.s32.totalorder %s36, 0
      %p257 = por %p255, %p256
      %s259 = sadd.s32 %s258, 1
      %p262 = scmp.eq.s32.totalorder %s30, 3
      %p263 = scmp.ne.s32.totalorder %s258, %s260
      %p264 = scmp.eq.s32.totalorder %s30, 0
      %p265 = por %p263, %p264
      %p266 = scmp.ne.s32.totalorder %s258, %s260
      %p267 = scmp.eq.s32.totalorder %s35, 3
      %p268 = por %p266, %p267
      %p269 = scmp.ne.s32.totalorder %s260, %s261
      %p270 = scmp.eq.s32.totalorder %s35, 0
      %p271 = por %p269, %p270
      %p272 = scmp.ne.s32.totalorder %s260, %s261
      %p273 = scmp.eq.s32.totalorder %s36, 3
      %p274 = por %p272, %p273
      %p276 = scmp.ne.s32.totalorder %s261, %s275
      %p277 = scmp.eq.s32.totalorder %s36, 0
      %p278 = por %p276, %p277
      %s280 = sadd.s32 %s279, 1
      %p283 = scmp.eq.s32.totalorder %s30, 3
      %p284 = scmp.ne.s32.totalorder %s279, %s281
      %p285 = scmp.eq.s32.totalorder %s30, 0
      %p286 = por %p284, %p285
      %p287 = scmp.ne.s32.totalorder %s279, %s281
      %p288 = scmp.eq.s32.totalorder %s35, 3
      %p289 = por %p287, %p288
      %p290 = scmp.ne.s32.totalorder %s281, %s282
      %p291 = scmp.eq.s32.totalorder %s35, 0
      %p292 = por %p290, %p291
      %p293 = scmp.ne.s32.totalorder %s281, %s282
      %p294 = scmp.eq.s32.totalorder %s36, 3
      %p295 = por %p293, %p294
      %p297 = scmp.ne.s32.totalorder %s282, %s296
      %p298 = scmp.eq.s32.totalorder %s36, 0
      %p299 = por %p297, %p298
      %s301 = sadd.s32 %s300, 1
      %p304 = scmp.eq.s32.totalorder %s30, 3
      %p305 = scmp.ne.s32.totalorder %s300, %s302
      %p306 = scmp.eq.s32.totalorder %s30, 0
      %p307 = por %p305, %p306
      %p308 = scmp.ne.s32.totalorder %s300, %s302
      %p309 = scmp.eq.s32.totalorder %s35, 3
      %p310 = por %p308, %p309
      %p311 = scmp.ne.s32.totalorder %s302, %s303
      %p312 = scmp.eq.s32.totalorder %s35, 0
      %p313 = por %p311, %p312
      %p314 = scmp.ne.s32.totalorder %s302, %s303
      %p315 = scmp.eq.s32.totalorder %s36, 3
      %p316 = por %p314, %p315
      %p318 = scmp.ne.s32.totalorder %s303, %s317
      %p319 = scmp.eq.s32.totalorder %s36, 0
      %p320 = por %p318, %p319
      %s322 = sadd.s32 %s321, 1
      %p325 = scmp.eq.s32.totalorder %s30, 3
      %p326 = scmp.ne.s32.totalorder %s321, %s323
      %p327 = scmp.eq.s32.totalorder %s30, 0
      %p328 = por %p326, %p327
      %p329 = scmp.ne.s32.totalorder %s321, %s323
      %p330 = scmp.eq.s32.totalorder %s35, 3
      %p331 = por %p329, %p330
      %p332 = scmp.ne.s32.totalorder %s323, %s324
      %p333 = scmp.eq.s32.totalorder %s35, 0
      %p334 = por %p332, %p333
      %p335 = scmp.ne.s32.totalorder %s323, %s324
      %p336 = scmp.eq.s32.totalorder %s36, 3
      %p337 = por %p335, %p336
      %p339 = scmp.ne.s32.totalorder %s324, %s338
      %p340 = scmp.eq.s32.totalorder %s36, 0
      %p341 = por %p339, %p340
      %s343 = sadd.s32 %s342, 1
      %p346 = scmp.eq.s32.totalorder %s30, 3
      %p347 = scmp.ne.s32.totalorder %s342, %s344
      %p348 = scmp.eq.s32.totalorder %s30, 0
      %p349 = por %p347, %p348
      %p350 = scmp.ne.s32.totalorder %s342, %s344
      %p351 = scmp.eq.s32.totalorder %s35, 3
      %p352 = por %p350, %p351
      %p353 = scmp.ne.s32.totalorder %s344, %s345
      %p354 = scmp.eq.s32.totalorder %s35, 0
      %p355 = por %p353, %p354
      %p356 = scmp.ne.s32.totalorder %s344, %s345
      %p357 = scmp.eq.s32.totalorder %s36, 3
      %p358 = por %p356, %p357
      %p360 = scmp.ne.s32.totalorder %s345, %s359
      %p361 = scmp.eq.s32.totalorder %s36, 0
      %p362 = por %p360, %p361
      %p363 = scmp.le.s32.totalorder 1, %s30
      %p364 = scmp.lt.s32.totalorder %s30, 5
      %p365 = pnand %p363, %p364
      %p366 = pneg %p365
      // Predicated region
      $region9: #{_fused_forward.1} parent=5 // pred_check
        _
      $region10: #{_fused_forward.1} parent=5 // pred_check_branch
        %368 = sbr.rel (%p365) target = $region12
      $region11: #{_fused_forward.1} parent=5 // pred_region
        %s369 = ssub.s32 %s30, 1
        // Predicated region
        $region13: #{_fused_forward.1} parent=11 // pred_check
          %p370 = pneg %p51
        $region14: #{_fused_forward.1} parent=11 // pred_check_branch
          %372 = sbr.rel (%p370) target = $region16
        $region15: #{_fused_forward.1} parent=11 // pred_region
          _
        $region16: #{_fused_forward.1} parent=11 // pred_fallthru
          _
        // Predicated region
        $region17: #{_fused_forward.1} parent=11 // pred_check
          %p373 = pneg %p124
        $region18: #{_fused_forward.1} parent=11 // pred_check_branch
          %375 = sbr.rel (%p373) target = $region20
        $region19: #{_fused_forward.1} parent=11 // pred_region
          %s377 = ssub.s32 16, 16
          %378 = vsyncadd [#allocation8], %s377
          %s380 = sshll.u32 [#allocation9], 4
          %s381 = int_to_ptr.vmem [resolvable:$true] %s380
          %383 = dma.hbm_to_vmem [thread:$0]  %s3, 16, %s381, [#allocation8]
        $region20: #{_fused_forward.1} parent=11 // pred_fallthru
          _
        // Predicated region
        $region21: #{_fused_forward.1} parent=11 // pred_check
          %p384 = pneg %p145
        $region22: #{_fused_forward.1} parent=11 // pred_check_branch
          %386 = sbr.rel (%p384) target = $region24
        $region23: #{_fused_forward.1} parent=11 // pred_region
          _
        $region24: #{_fused_forward.1} parent=11 // pred_fallthru
          _
        // Predicated region
        $region25: #{_fused_forward.1} parent=11 // pred_check
          %p387 = pneg %p166
        $region26: #{_fused_forward.1} parent=11 // pred_check_branch
          %389 = sbr.rel (%p387) target = $region28
        $region27: #{_fused_forward.1} parent=11 // pred_region
          _
        $region28: #{_fused_forward.1} parent=11 // pred_fallthru
          _
        // Predicated region
        $region29: #{_fused_forward.1} parent=11 // pred_check
          %p390 = pneg %p187
        $region30: #{_fused_forward.1} parent=11 // pred_check_branch
          %392 = sbr.rel (%p390) target = $region32
        $region31: #{_fused_forward.1} parent=11 // pred_region
          _
        $region32: #{_fused_forward.1} parent=11 // pred_fallthru
          _
        // Predicated region
        $region33: #{_fused_forward.1} parent=11 // pred_check
          %p393 = pneg %p208
        $region34: #{_fused_forward.1} parent=11 // pred_check_branch
          %395 = sbr.rel (%p393) target = $region36
        $region35: #{_fused_forward.1} parent=11 // pred_region
          _
        $region36: #{_fused_forward.1} parent=11 // pred_fallthru
          _
        // Predicated region
        $region37: #{_fused_forward.1} parent=11 // pred_check
          %p396 = pneg %p229
        $region38: #{_fused_forward.1} parent=11 // pred_check_branch
          %398 = sbr.rel (%p396) target = $region40
        $region39: #{_fused_forward.1} parent=11 // pred_region
          _
        $region40: #{_fused_forward.1} parent=11 // pred_fallthru
          _
        // Predicated region
        $region41: #{_fused_forward.1} parent=11 // pred_check
          %p399 = pneg %p250
        $region42: #{_fused_forward.1} parent=11 // pred_check_branch
          %401 = sbr.rel (%p399) target = $region44
        $region43: #{_fused_forward.1} parent=11 // pred_region
          _
        $region44: #{_fused_forward.1} parent=11 // pred_fallthru
          _
      $region12: #{_fused_forward.1} parent=5 // pred_fallthru
        _
      %p402 = scmp.lt.s32.totalorder %s30, 4
      // Predicated region
      $region45: #{_fused_forward.1} parent=5 // pred_check
        %p403 = pneg %p402
      $region46: #{_fused_forward.1} parent=5 // pred_check_branch
        %405 = sbr.rel (%p403) target = $region48
      $region47: #{_fused_forward.1} parent=5 // pred_region
        // Predicated region
        $region49: #{_fused_forward.1} parent=47 // pred_check
          %p406 = pneg %p71
        $region50: #{_fused_forward.1} parent=47 // pred_check_branch
          %408 = sbr.rel (%p406) target = $region52
        $region51: #{_fused_forward.1} parent=47 // pred_region
          %s409 = sand.u32 %s61, 1
          %s410 = scalar_lea.sflag [#allocation5], %s409
          %s411 = sand.u32 %s61, 1
          %s412 = smul.addr %s411, 8
          %s413 = scalar_lea.vmem [#allocation4], %s412
          %s414 = smul.u32 2, %s30
          %s416 = ssub.s32 128, 128
          %417 = vsyncadd %s410, %s416
          %s418 = smul.addr %s414, 64
          %s419 = scalar_lea.hbm %s1, %s418
          %s421 = sshll.u32 %s413, 4
          %s422 = int_to_ptr.vmem [resolvable:$true] %s421
          %424 = dma.hbm_to_vmem [thread:$0]  %s419, 128, %s422, %s410
        $region52: #{_fused_forward.1} parent=47 // pred_fallthru
          _
        // Predicated region
        $region53: #{_fused_forward.1} parent=47 // pred_check
          %p425 = pneg %p97
        $region54: #{_fused_forward.1} parent=47 // pred_check_branch
          %427 = sbr.rel (%p425) target = $region56
        $region55: #{_fused_forward.1} parent=47 // pred_region
          %s428 = sand.u32 %s30, 1
          %s429 = scalar_lea.sflag [#allocation8], %s428
          %s430 = sand.u32 %s87, 1
          %s431 = smul.addr %s430, 128
          %s432 = scalar_lea.vmem [#allocation7], %s431
          %s433 = smul.u32 32, %s30
          %s435 = ssub.s32 2048, 2048
          %436 = vsyncadd %s429, %s435
          %s437 = smul.addr %s433, 64
          %s438 = scalar_lea.hbm %s2, %s437
          %s439 = sshll.u32 %s432, 4
          %s440 = int_to_ptr.vmem [resolvable:$true] %s439
          %445 = dma.hbm_to_vmem [thread:$0]  %s438, 2048, %s440, %s429, 64, 64, 4
        $region56: #{_fused_forward.1} parent=47 // pred_fallthru
          _
      $region48: #{_fused_forward.1} parent=5 // pred_fallthru
        _
      %p446 = scmp.le.s32.totalorder 1, %s30
      %p447 = scmp.lt.s32.totalorder %s30, 5
      %p448 = pnand %p446, %p447
      %p449 = pneg %p448
      // Predicated region
      $region57: #{_fused_forward.1} parent=5 // pred_check
        _
      $region58: #{_fused_forward.1} parent=5 // pred_check_branch
        %451 = sbr.rel (%p448) target = $region60
      $region59: #{_fused_forward.1} parent=5 // pred_region
        %s452 = ssub.s32 %s30, 1
        %s453 = sand.u32 %s64, 1
        %s454 = scalar_lea.sflag [#allocation5], %s453
        %s455 = sand.u32 %s64, 1
        %s456 = smul.addr %s455, 8
        %s457 = scalar_lea.vmem [#allocation4], %s456
        // Predicated region
        $region61: #{_fused_forward.1} parent=59 // pred_check
          %p458 = pneg %p77
        $region62: #{_fused_forward.1} parent=59 // pred_check_branch
          %460 = sbr.rel (%p458) target = $region64
        $region63: #{_fused_forward.1} parent=59 // pred_region
          %461 = dma.done %s454, 128
        $region64: #{_fused_forward.1} parent=59 // pred_fallthru
          _
        %s462 = sand.u32 %s35, 1
        %s463 = scalar_lea.sflag [#allocation8], %s462
        %s464 = sand.u32 %s90, 1
        %s465 = smul.addr %s464, 128
        %s466 = scalar_lea.vmem [#allocation7], %s465
        // Predicated region
        $region65: #{_fused_forward.1} parent=59 // pred_check
          %p467 = pneg %p103
        $region66: #{_fused_forward.1} parent=59 // pred_check_branch
          %469 = sbr.rel (%p467) target = $region68
        $region67: #{_fused_forward.1} parent=59 // pred_region
          %470 = dma.done %s463, 2048
        $region68: #{_fused_forward.1} parent=59 // pred_fallthru
          _
        // Predicated region
        $region69: #{_fused_forward.1} parent=59 // pred_check
          %p471 = pneg %p124
        $region70: #{_fused_forward.1} parent=59 // pred_check_branch
          %473 = sbr.rel (%p471) target = $region72
        $region71: #{_fused_forward.1} parent=59 // pred_region
          %474 = dma.done [#allocation8], 16
        $region72: #{_fused_forward.1} parent=59 // pred_fallthru
          _
        %p475 = pneg %p51
        %p476 = pneg %p48
        %s477 = sand.u32 %s64, 1
        %s478 = scalar_lea.sflag [#allocation5], %s477
        %s479 = sand.u32 %s64, 1
        %s480 = smul.addr %s479, 8
        %s481 = scalar_lea.vmem [#allocation4], %s480
        %p482 = pneg %p77
        %p483 = pneg %p74
        %s484 = sand.u32 %s35, 1
        %s485 = scalar_lea.sflag [#allocation8], %s484
        %s486 = sand.u32 %s90, 1
        %s487 = smul.addr %s486, 128
        %s488 = scalar_lea.vmem [#allocation7], %s487
        %p489 = pneg %p103
        %p490 = pneg %p100
        %p491 = pneg %p124
        %p492 = pneg %p121
        %p493 = pneg %p145
        %p494 = pneg %p142
        %p495 = pneg %p166
        %p496 = pneg %p163
        %p497 = pneg %p187
        %p498 = pneg %p184
        %p499 = pneg %p208
        %p500 = pneg %p205
        %p501 = pneg %p229
        %p502 = pneg %p226
        %p503 = pneg %p250
        %p504 = pneg %p247
        %p505 = pneg %p271
        %p506 = pneg %p268
        %p507 = pneg %p292
        %p508 = pneg %p289
        %p509 = pneg %p313
        %p510 = pneg %p310
        %p511 = pneg %p334
        %p512 = pneg %p331
        %p513 = pneg %p355
        %p514 = pneg %p352
        %s515 = smul.u32 2, %s35
        %s516 = smul.u32 32, %s35
        %p518 = scmp.eq.s32.totalorder %s35, 0
        // Predicated region
        $region73: #{_fused_forward.1} parent=59 // pred_check
          %p519 = pneg %p518
        $region74: #{_fused_forward.1} parent=59 // pred_check_branch
          %521 = sbr.rel (%p519) target = $region76
        $region75: #{_fused_forward.1} parent=59 // pred_region
          %522 = vst [vmem:[#allocation2] sm:$0xff] 0.0
        $region76: #{_fused_forward.1} parent=59 // pred_fallthru
          _
        %v523 = vld [vmem:[#allocation2] sm:$0xff]
        %v524 = vld [vmem:[%s457] sm:$0xff]
        %v525 = vld [vmem:[%s466] sm:$0xf]
        %v526 = vld [vmem:[%s466 + $0x4] sm:$0xf]
        %v527 = vld [vmem:[%s466 + $0x8] sm:$0xf]
        %v528 = vld [vmem:[%s466 + $0xc] sm:$0xf]
        %v529 = vld [vmem:[%s466 + $0x10] sm:$0xf]
        %v530 = vld [vmem:[%s466 + $0x14] sm:$0xf]
        %v531 = vld [vmem:[%s466 + $0x18] sm:$0xf]
        %v532 = vld [vmem:[%s466 + $0x1c] sm:$0xf]
        %v533 = vld [vmem:[%s466 + $0x20] sm:$0xf]
        %v534 = vld [vmem:[%s466 + $0x24] sm:$0xf]
        %v535 = vld [vmem:[%s466 + $0x28] sm:$0xf]
        %v536 = vld [vmem:[%s466 + $0x2c] sm:$0xf]
        %v537 = vld [vmem:[%s466 + $0x30] sm:$0xf]
        %v538 = vld [vmem:[%s466 + $0x34] sm:$0xf]
        %v539 = vld [vmem:[%s466 + $0x38] sm:$0xf]
        %v540 = vld [vmem:[%s466 + $0x3c] sm:$0xf]
        %v541 = vld [vmem:[%s466 + $0x40] sm:$0xf]
        %v542 = vld [vmem:[%s466 + $0x44] sm:$0xf]
        %v543 = vld [vmem:[%s466 + $0x48] sm:$0xf]
        %v544 = vld [vmem:[%s466 + $0x4c] sm:$0xf]
        %v545 = vld [vmem:[%s466 + $0x50] sm:$0xf]
        %v546 = vld [vmem:[%s466 + $0x54] sm:$0xf]
        %v547 = vld [vmem:[%s466 + $0x58] sm:$0xf]
        %v548 = vld [vmem:[%s466 + $0x5c] sm:$0xf]
        %v549 = vld [vmem:[%s466 + $0x60] sm:$0xf]
        %v550 = vld [vmem:[%s466 + $0x64] sm:$0xf]
        %v551 = vld [vmem:[%s466 + $0x68] sm:$0xf]
        %v552 = vld [vmem:[%s466 + $0x6c] sm:$0xf]
        %v553 = vld [vmem:[%s466 + $0x70] sm:$0xf]
        %v554 = vld [vmem:[%s466 + $0x74] sm:$0xf]
        %v555 = vld [vmem:[%s466 + $0x78] sm:$0xf]
        %v556 = vld [vmem:[%s466 + $0x7c] sm:$0xf]
        %v558 = vunpack.c.l.b16 %v524
        %v559 = vunpack.c.h.b16 %v524
        %v560 = vpack.c.b16 %v558, %v558
        %v561 = vpack.c.b16 %v559, %v559
        %v596 = vunpack.c.l.b16 %v525
        %v597 = vunpack.c.l.b16 %v526
        %v598 = vunpack.c.l.b16 %v527
        %v599 = vunpack.c.l.b16 %v528
        %v600 = vunpack.c.l.b16 %v529
        %v601 = vunpack.c.l.b16 %v530
        %v602 = vunpack.c.l.b16 %v531
        %v603 = vunpack.c.l.b16 %v532
        %v604 = vunpack.c.l.b16 %v533
        %v605 = vunpack.c.l.b16 %v534
        %v606 = vunpack.c.l.b16 %v535
        %v607 = vunpack.c.l.b16 %v536
        %v608 = vunpack.c.l.b16 %v537
        %v609 = vunpack.c.l.b16 %v538
        %v610 = vunpack.c.l.b16 %v539
        %v611 = vunpack.c.l.b16 %v540
        %v612 = vunpack.c.l.b16 %v541
        %v613 = vunpack.c.l.b16 %v542
        %v614 = vunpack.c.l.b16 %v543
        %v615 = vunpack.c.l.b16 %v544
        %v616 = vunpack.c.l.b16 %v545
        %v617 = vunpack.c.l.b16 %v546
        %v618 = vunpack.c.l.b16 %v547
        %v619 = vunpack.c.l.b16 %v548
        %v620 = vunpack.c.l.b16 %v549
        %v621 = vunpack.c.l.b16 %v550
        %v622 = vunpack.c.l.b16 %v551
        %v623 = vunpack.c.l.b16 %v552
        %v624 = vunpack.c.l.b16 %v553
        %v625 = vunpack.c.l.b16 %v554
        %v626 = vunpack.c.l.b16 %v555
        %v627 = vunpack.c.l.b16 %v556
        %v628 = vpack.c.b16 %v597, %v596
        %v629 = vpack.c.b16 %v599, %v598
        %v630 = vpack.c.b16 %v601, %v600
        %v631 = vpack.c.b16 %v603, %v602
        %v632 = vpack.c.b16 %v605, %v604
        %v633 = vpack.c.b16 %v607, %v606
        %v634 = vpack.c.b16 %v609, %v608
        %v635 = vpack.c.b16 %v611, %v610
        %v636 = vpack.c.b16 %v613, %v612
        %v637 = vpack.c.b16 %v615, %v614
        %v638 = vpack.c.b16 %v617, %v616
        %v639 = vpack.c.b16 %v619, %v618
        %v640 = vpack.c.b16 %v621, %v620
        %v641 = vpack.c.b16 %v623, %v622
        %v642 = vpack.c.b16 %v625, %v624
        %v643 = vpack.c.b16 %v627, %v626
        %660 = vmatprep.subr.bf16.mxu0 0
        %661 = vmatpush1.bf16.msra.mxu0 %v628
        %662 = vmatprep.subr.bf16.mxu0 0
        %663 = vmatpush1.bf16.msra.mxu0 %v629
        %664 = vmatprep.subr.bf16.mxu0 0
        %665 = vmatpush1.bf16.msra.mxu0 %v630
        %666 = vmatprep.subr.bf16.mxu0 0
        %667 = vmatpush1.bf16.msra.mxu0 %v631
        %668 = vmatprep.subr.bf16.mxu0 0
        %669 = vmatpush1.bf16.msra.mxu0 %v632
        %670 = vmatprep.subr.bf16.mxu0 0
        %671 = vmatpush1.bf16.msra.mxu0 %v633
        %672 = vmatprep.subr.bf16.mxu0 0
        %673 = vmatpush1.bf16.msra.mxu0 %v634
        %674 = vmatprep.subr.bf16.mxu0 0
        %675 = vmatpush1.bf16.msra.mxu0 %v635
        %676 = vmatprep.subr.bf16.mxu0 0
        %677 = vmatpush1.bf16.msra.mxu0 %v636
        %678 = vmatprep.subr.bf16.mxu0 0
        %679 = vmatpush1.bf16.msra.mxu0 %v637
        %680 = vmatprep.subr.bf16.mxu0 0
        %681 = vmatpush1.bf16.msra.mxu0 %v638
        %682 = vmatprep.subr.bf16.mxu0 0
        %683 = vmatpush1.bf16.msra.mxu0 %v639
        %684 = vmatprep.subr.bf16.mxu0 0
        %685 = vmatpush1.bf16.msra.mxu0 %v640
        %686 = vmatprep.subr.bf16.mxu0 0
        %687 = vmatpush1.bf16.msra.mxu0 %v641
        %688 = vmatprep.subr.bf16.mxu0 0
        %689 = vmatpush1.bf16.msra.mxu0 %v642
        %690 = vmatprep.subr.bf16.mxu0 0
        %691 = vmatpush1.bf16.msra.mxu0 %v643
        %692 = vmatprep.mubr.bf16.mxu0 %v561
        %693 = vmatmul.mubr.bf16.gmra.mrb[0].mxu0 %v560
        %v694 = vpop.f32.mrb[0].mxu0
        %v695 = vadd.f32 0.0, %v694
        %v696 = vpop.f32.mrb[0].mxu0
        %v697 = vpop.f32.mrb[0].mxu0
        %v698 = vpop.f32.mrb[0].mxu0
        %699 = vdwg.mxu0
        %v700 = vadd.f32 %v523, %v695
        %701 = vst [vmem:[#allocation2] sm:$0xff] %v700
        %p702 = scmp.eq.s32.totalorder %s35, 3
        // Predicated region
        $region77: #{_fused_forward.1} parent=59 // pred_check
          %p703 = pneg %p702
        $region78: #{_fused_forward.1} parent=59 // pred_check_branch
          %705 = sbr.rel (%p703) target = $region80
        $region79: #{_fused_forward.1} parent=59 // pred_region
          %v706 = vld [vmem:[#allocation2] sm:$0xff]
          %v707 = vld [vmem:[#allocation9] sm:$0x1]
          %v709 = vlaneseq
          %v710 = vshrl.u32 %v709, 7
          %v711 = vsub.s32 0, %v710
          %v712 = vrot.slane %v707, %v711
          %v714 = vadd.f32 %v706, %v712
          %v715 = vld [vmem:[%s4] sm:$0xff]
          %v716 = vld [vmem:[%s4 + $0x8] sm:$0xff]
          %v717 = vld [vmem:[%s4 + $0x10] sm:$0xff]
          %v718 = vld [vmem:[%s4 + $0x18] sm:$0xff]
          %v719 = vld [vmem:[%s4 + $0x20] sm:$0xff]
          %v720 = vld [vmem:[%s4 + $0x28] sm:$0xff]
          %v721 = vld [vmem:[%s4 + $0x30] sm:$0xff]
          %v722 = vld [vmem:[%s4 + $0x38] sm:$0xff]
          %v723 = vld [vmem:[%s4 + $0x40] sm:$0xff]
          %v724 = vld [vmem:[%s4 + $0x48] sm:$0xff]
          %v725 = vld [vmem:[%s4 + $0x50] sm:$0xff]
          %v726 = vld [vmem:[%s4 + $0x58] sm:$0xff]
          %v727 = vld [vmem:[%s4 + $0x60] sm:$0xff]
          %v728 = vld [vmem:[%s4 + $0x68] sm:$0xff]
          %v729 = vld [vmem:[%s4 + $0x70] sm:$0xff]
          %v730 = vld [vmem:[%s4 + $0x78] sm:$0xff]
          %v731 = vld [vmem:[%s6] sm:$0xff]
          %v732 = vld [vmem:[%s7] sm:$0xff]
          %v733 = vld [vmem:[%s7 + $0x8] sm:$0xff]
          %v734 = vld [vmem:[%s7 + $0x10] sm:$0xff]
          %v735 = vld [vmem:[%s7 + $0x18] sm:$0xff]
          %v736 = vld [vmem:[%s7 + $0x20] sm:$0xff]
          %v737 = vld [vmem:[%s7 + $0x28] sm:$0xff]
          %v738 = vld [vmem:[%s7 + $0x30] sm:$0xff]
          %v739 = vld [vmem:[%s7 + $0x38] sm:$0xff]
          %v740 = vld [vmem:[%s7 + $0x40] sm:$0xff]
          %v741 = vld [vmem:[%s7 + $0x48] sm:$0xff]
          %v742 = vld [vmem:[%s7 + $0x50] sm:$0xff]
          %v743 = vld [vmem:[%s7 + $0x58] sm:$0xff]
          %v744 = vld [vmem:[%s7 + $0x60] sm:$0xff]
          %v745 = vld [vmem:[%s7 + $0x68] sm:$0xff]
          %v746 = vld [vmem:[%s7 + $0x70] sm:$0xff]
          %v747 = vld [vmem:[%s7 + $0x78] sm:$0xff]
          %v748 = vld [vmem:[%s8] sm:$0xff]
          %v749 = vld [vmem:[%s8 + $0x8] sm:$0xff]
          %v750 = vld [vmem:[%s8 + $0x10] sm:$0xff]
          %v751 = vld [vmem:[%s8 + $0x18] sm:$0xff]
          %v752 = vld [vmem:[%s8 + $0x20] sm:$0xff]
          %v753 = vld [vmem:[%s8 + $0x28] sm:$0xff]
          %v754 = vld [vmem:[%s8 + $0x30] sm:$0xff]
          %v755 = vld [vmem:[%s8 + $0x38] sm:$0xff]
          %v756 = vld [vmem:[%s8 + $0x40] sm:$0xff]
          %v757 = vld [vmem:[%s8 + $0x48] sm:$0xff]
          %v758 = vld [vmem:[%s8 + $0x50] sm:$0xff]
          %v759 = vld [vmem:[%s8 + $0x58] sm:$0xff]
          %v760 = vld [vmem:[%s8 + $0x60] sm:$0xff]
          %v761 = vld [vmem:[%s8 + $0x68] sm:$0xff]
          %v762 = vld [vmem:[%s8 + $0x70] sm:$0xff]
          %v763 = vld [vmem:[%s8 + $0x78] sm:$0xff]
          %v764 = vld [vmem:[%s9] sm:$0xff]
          %v765 = vld [vmem:[%s9 + $0x8] sm:$0xff]
          %v766 = vld [vmem:[%s9 + $0x10] sm:$0xff]
          %v767 = vld [vmem:[%s9 + $0x18] sm:$0xff]
          %v768 = vld [vmem:[%s9 + $0x20] sm:$0xff]
          %v769 = vld [vmem:[%s9 + $0x28] sm:$0xff]
          %v770 = vld [vmem:[%s9 + $0x30] sm:$0xff]
          %v771 = vld [vmem:[%s9 + $0x38] sm:$0xff]
          %v772 = vld [vmem:[%s9 + $0x40] sm:$0xff]
          %v773 = vld [vmem:[%s9 + $0x48] sm:$0xff]
          %v774 = vld [vmem:[%s9 + $0x50] sm:$0xff]
          %v775 = vld [vmem:[%s9 + $0x58] sm:$0xff]
          %v776 = vld [vmem:[%s9 + $0x60] sm:$0xff]
          %v777 = vld [vmem:[%s9 + $0x68] sm:$0xff]
          %v778 = vld [vmem:[%s9 + $0x70] sm:$0xff]
          %v779 = vld [vmem:[%s9 + $0x78] sm:$0xff]
          %s780 = sld [smem:[#allocation3]]
          %v781 = vld [vmem:[%s5] sm:$0x1]
          %v783 = vlaneseq
          %v784 = vshrl.u32 %v783, 7
          %v785 = vsub.s32 0, %v784
          %v786 = vrot.slane %v781, %v785
          %788 = vmatprep.subr.mxu0 0.0
          %789 = vmatpush1.xpose.msra.mxu0 %v715
          %790 = vmatprep.subr.mxu0 0.0
          %791 = vmatpush1.xpose.msra.mxu0 %v716
          %792 = vmatprep.subr.mxu0 0.0
          %793 = vmatpush1.xpose.msra.mxu0 %v717
          %794 = vmatprep.subr.mxu0 0.0
          %795 = vmatpush1.xpose.msra.mxu0 %v718
          %796 = vmatprep.subr.mxu0 0.0
          %797 = vmatpush1.xpose.msra.mxu0 %v719
          %798 = vmatprep.subr.mxu0 0.0
          %799 = vmatpush1.xpose.msra.mxu0 %v720
          %800 = vmatprep.subr.mxu0 0.0
          %801 = vmatpush1.xpose.msra.mxu0 %v721
          %802 = vmatprep.subr.mxu0 0.0
          %803 = vmatpush1.xpose.msra.mxu0 %v722
          %804 = vmatprep.subr.mxu0 0.0
          %805 = vmatpush1.xpose.msra.mxu0 %v723
          %806 = vmatprep.subr.mxu0 0.0
          %807 = vmatpush1.xpose.msra.mxu0 %v724
          %808 = vmatprep.subr.mxu0 0.0
          %809 = vmatpush1.xpose.msra.mxu0 %v725
          %810 = vmatprep.subr.mxu0 0.0
          %811 = vmatpush1.xpose.msra.mxu0 %v726
          %812 = vmatprep.subr.mxu0 0.0
          %813 = vmatpush1.xpose.msra.mxu0 %v727
          %814 = vmatprep.subr.mxu0 0.0
          %815 = vmatpush1.xpose.msra.mxu0 %v728
          %816 = vmatprep.subr.mxu0 0.0
          %817 = vmatpush1.xpose.msra.mxu0 %v729
          %818 = vmatprep.subr.mxu0 0.0
          %819 = vmatpush1.xpose.msra.mxu0 %v730
          %820 = vmatprep.subr.mxu0 0.0
          %821 = vmatpush1.xpose.msra.mxu0 0.0
          %822 = vmatprep.subr.mxu0 0.0
          %823 = vmatpush1.xpose.msra.mxu0 0.0
          %824 = vmatprep.subr.mxu0 0.0
          %825 = vmatpush1.xpose.msra.mxu0 0.0
          %826 = vmatprep.subr.mxu0 0.0
          %827 = vmatpush1.xpose.msra.mxu0 0.0
          %828 = vmatprep.subr.mxu0 0.0
          %829 = vmatpush1.xpose.msra.mxu0 0.0
          %830 = vmatprep.subr.mxu0 0.0
          %831 = vmatpush1.xpose.msra.mxu0 0.0
          %832 = vmatprep.subr.mxu0 0.0
          %833 = vmatpush1.xpose.msra.mxu0 0.0
          %834 = vmatprep.subr.mxu0 0.0
          %835 = vmatpush1.xpose.msra.mxu0 0.0
          %836 = vmatprep.subr.mxu0 0.0
          %837 = vmatpush1.xpose.msra.mxu0 0.0
          %838 = vmatprep.subr.mxu0 0.0
          %839 = vmatpush1.xpose.msra.mxu0 0.0
          %840 = vmatprep.subr.mxu0 0.0
          %841 = vmatpush1.xpose.msra.mxu0 0.0
          %842 = vmatprep.subr.mxu0 0.0
          %843 = vmatpush1.xpose.msra.mxu0 0.0
          %844 = vmatprep.subr.mxu0 0.0
          %845 = vmatpush1.xpose.msra.mxu0 0.0
          %846 = vmatprep.subr.mxu0 0.0
          %847 = vmatpush1.xpose.msra.mxu0 0.0
          %848 = vmatprep.subr.mxu0 0.0
          %849 = vmatpush1.xpose.msra.mxu0 0.0
          %850 = vmatprep.subr.mxu0 0.0
          %851 = vmatpush1.xpose.msra.mxu0 0.0
          %852 = vmatprep.mubr.f32.mxu0 0.0
          %853 = vmatmul.mubr.f32.gmra.mrb[0].mxu0 %v714
          %v854 = vpop.f32.mrb[0].mxu0
          %v855 = vadd.f32 %v786, %v854
          %v856 = vpop.f32.mrb[0].mxu0
          %857 = vdwg.mxu0
          %858 = vst [vmem:[#allocation11] sm:$0xff] %v855
          %859 = vxpose.xlu0.b32.start [1/16] %v731, 128
          %860 = vxpose.xlu0.b32.cont [2/16] 0.0, 128
          %861 = vxpose.xlu0.b32.cont [3/16] 0.0, 128
          %862 = vxpose.xlu0.b32.cont [4/16] 0.0, 128
          %863 = vxpose.xlu0.b32.cont [5/16] 0.0, 128
          %864 = vxpose.xlu0.b32.cont [6/16] 0.0, 128
          %865 = vxpose.xlu0.b32.cont [7/16] 0.0, 128
          %866 = vxpose.xlu0.b32.cont [8/16] 0.0, 128
          %867 = vxpose.xlu0.b32.cont [9/16] 0.0, 128
          %868 = vxpose.xlu0.b32.cont [10/16] 0.0, 128
          %869 = vxpose.xlu0.b32.cont [11/16] 0.0, 128
          %870 = vxpose.xlu0.b32.cont [12/16] 0.0, 128
          %871 = vxpose.xlu0.b32.cont [13/16] 0.0, 128
          %872 = vxpose.xlu0.b32.cont [14/16] 0.0, 128
          %873 = vxpose.xlu0.b32.cont [15/16] 0.0, 128
          %874 = vxpose.xlu0.b32.end [16/16] 0.0, 128
          %v875 = vpop.trf.xlu0
          %v876 = vpop.trf.xlu0
          %v877 = vpop.trf.xlu0
          %v878 = vpop.trf.xlu0
          %v879 = vpop.trf.xlu0
          %v880 = vpop.trf.xlu0
          %v881 = vpop.trf.xlu0
          %v882 = vpop.trf.xlu0
          %v883 = vpop.trf.xlu0
          %v884 = vpop.trf.xlu0
          %v885 = vpop.trf.xlu0
          %v886 = vpop.trf.xlu0
          %v887 = vpop.trf.xlu0
          %v888 = vpop.trf.xlu0
          %v889 = vpop.trf.xlu0
          %v890 = vpop.trf.xlu0
          %vm891 = vcmask 64512
          %v893 = vsel %vm891, %v875, 0
          %v896 = vsel %vm891, %v876, 0
          %v899 = vsel %vm891, %v877, 0
          %v902 = vsel %vm891, %v878, 0
          %v905 = vsel %vm891, %v879, 0
          %v908 = vsel %vm891, %v880, 0
          %v911 = vsel %vm891, %v881, 0
          %v914 = vsel %vm891, %v882, 0
          %v917 = vsel %vm891, %v883, 0
          %v920 = vsel %vm891, %v884, 0
          %v923 = vsel %vm891, %v885, 0
          %v926 = vsel %vm891, %v886, 0
          %v929 = vsel %vm891, %v887, 0
          %v932 = vsel %vm891, %v888, 0
          %v935 = vsel %vm891, %v889, 0
          %v938 = vsel %vm891, %v890, 0
          %940 = vmatprep.subr.mxu0 0.0
          %941 = vmatpush1.msra.mxu0 1.0
          %942 = vmatprep.subr.mxu0 0.0
          %943 = vmatpush1.msra.mxu0 0.0
          %944 = vmatprep.subr.mxu0 0.0
          %945 = vmatpush1.msra.mxu0 0.0
          %946 = vmatprep.subr.mxu0 0.0
          %947 = vmatpush1.msra.mxu0 0.0
          %948 = vmatprep.subr.mxu0 0.0
          %949 = vmatpush1.msra.mxu0 0.0
          %950 = vmatprep.subr.mxu0 0.0
          %951 = vmatpush1.msra.mxu0 0.0
          %952 = vmatprep.subr.mxu0 0.0
          %953 = vmatpush1.msra.mxu0 0.0
          %954 = vmatprep.subr.mxu0 0.0
          %955 = vmatpush1.msra.mxu0 0.0
          %956 = vmatprep.subr.mxu0 0.0
          %957 = vmatpush1.msra.mxu0 0.0
          %958 = vmatprep.subr.mxu0 0.0
          %959 = vmatpush1.msra.mxu0 0.0
          %960 = vmatprep.subr.mxu0 0.0
          %961 = vmatpush1.msra.mxu0 0.0
          %962 = vmatprep.subr.mxu0 0.0
          %963 = vmatpush1.msra.mxu0 0.0
          %964 = vmatprep.subr.mxu0 0.0
          %965 = vmatpush1.msra.mxu0 0.0
          %966 = vmatprep.subr.mxu0 0.0
          %967 = vmatpush1.msra.mxu0 0.0
          %968 = vmatprep.subr.mxu0 0.0
          %969 = vmatpush1.msra.mxu0 0.0
          %970 = vmatprep.subr.mxu0 0.0
          %971 = vmatpush1.msra.mxu0 0.0
          %972 = vmatprep.subr.mxu0 0.0
          %973 = vmatpush1.msra.mxu0 0.0
          %974 = vmatprep.subr.mxu0 0.0
          %975 = vmatpush1.msra.mxu0 0.0
          %976 = vmatprep.subr.mxu0 0.0
          %977 = vmatpush1.msra.mxu0 0.0
          %978 = vmatprep.subr.mxu0 0.0
          %979 = vmatpush1.msra.mxu0 0.0
          %980 = vmatprep.subr.mxu0 0.0
          %981 = vmatpush1.msra.mxu0 0.0
          %982 = vmatprep.subr.mxu0 0.0
          %983 = vmatpush1.msra.mxu0 0.0
          %984 = vmatprep.subr.mxu0 0.0
          %985 = vmatpush1.msra.mxu0 0.0
          %986 = vmatprep.subr.mxu0 0.0
          %987 = vmatpush1.msra.mxu0 0.0
          %988 = vmatprep.subr.mxu0 0.0
          %989 = vmatpush1.msra.mxu0 0.0
          %990 = vmatprep.subr.mxu0 0.0
          %991 = vmatpush1.msra.mxu0 0.0
          %992 = vmatprep.subr.mxu0 0.0
          %993 = vmatpush1.msra.mxu0 0.0
          %994 = vmatprep.subr.mxu0 0.0
          %995 = vmatpush1.msra.mxu0 0.0
          %996 = vmatprep.subr.mxu0 0.0
          %997 = vmatpush1.msra.mxu0 0.0
          %998 = vmatprep.subr.mxu0 0.0
          %999 = vmatpush1.msra.mxu0 0.0
          %1000 = vmatprep.subr.mxu0 0.0
          %1001 = vmatpush1.msra.mxu0 0.0
          %1002 = vmatprep.subr.mxu0 0.0
          %1003 = vmatpush1.msra.mxu0 0.0
          %1004 = vmatprep.mubr.f32.mxu0 0.0
          %1005 = vmatmul.mubr.f32.gmra.mrb[0].mxu0 %v893
          %v1006 = vpop.f32.mrb[0].mxu0
          %v1007 = vadd.f32 0.0, %v1006
          %v1008 = vpop.f32.mrb[0].mxu0
          %1009 = vmatprep.mubr.f32.mxu0 0.0
          %1010 = vmatmul.mubr.f32.gmra.mrb[0].mxu0 %v896
          %v1011 = vpop.f32.mrb[0].mxu0
          %v1012 = vadd.f32 0.0, %v1011
          %v1013 = vpop.f32.mrb[0].mxu0
          %1014 = vmatprep.mubr.f32.mxu0 0.0
          %1015 = vmatmul.mubr.f32.gmra.mrb[0].mxu0 %v899
          %v1016 = vpop.f32.mrb[0].mxu0
          %v1017 = vadd.f32 0.0, %v1016
          %v1018 = vpop.f32.mrb[0].mxu0
          %1019 = vmatprep.mubr.f32.mxu0 0.0
          %1020 = vmatmul.mubr.f32.gmra.mrb[0].mxu0 %v902
          %v1021 = vpop.f32.mrb[0].mxu0
          %v1022 = vadd.f32 0.0, %v1021
          %v1023 = vpop.f32.mrb[0].mxu0
          %1024 = vmatprep.mubr.f32.mxu0 0.0
          %1025 = vmatmul.mubr.f32.gmra.mrb[0].mxu0 %v905
          %v1026 = vpop.f32.mrb[0].mxu0
          %v1027 = vadd.f32 0.0, %v1026
          %v1028 = vpop.f32.mrb[0].mxu0
          %1029 = vmatprep.mubr.f32.mxu0 0.0
          %1030 = vmatmul.mubr.f32.gmra.mrb[0].mxu0 %v908
          %v1031 = vpop.f32.mrb[0].mxu0
          %v1032 = vadd.f32 0.0, %v1031
          %v1033 = vpop.f32.mrb[0].mxu0
          %1034 = vmatprep.mubr.f32.mxu0 0.0
          %1035 = vmatmul.mubr.f32.gmra.mrb[0].mxu0 %v911
          %v1036 = vpop.f32.mrb[0].mxu0
          %v1037 = vadd.f32 0.0, %v1036
          %v1038 = vpop.f32.mrb[0].mxu0
          %1039 = vmatprep.mubr.f32.mxu0 0.0
          %1040 = vmatmul.mubr.f32.gmra.mrb[0].mxu0 %v914
          %v1041 = vpop.f32.mrb[0].mxu0
          %v1042 = vadd.f32 0.0, %v1041
          %v1043 = vpop.f32.mrb[0].mxu0
          %1044 = vmatprep.mubr.f32.mxu0 0.0
          %1045 = vmatmul.mubr.f32.gmra.mrb[0].mxu0 %v917
          %v1046 = vpop.f32.mrb[0].mxu0
          %v1047 = vadd.f32 0.0, %v1046
          %v1048 = vpop.f32.mrb[0].mxu0
          %1049 = vmatprep.mubr.f32.mxu0 0.0
          %1050 = vmatmul.mubr.f32.gmra.mrb[0].mxu0 %v920
          %v1051 = vpop.f32.mrb[0].mxu0
          %v1052 = vadd.f32 0.0, %v1051
          %v1053 = vpop.f32.mrb[0].mxu0
          %1054 = vmatprep.mubr.f32.mxu0 0.0
          %1055 = vmatmul.mubr.f32.gmra.mrb[0].mxu0 %v923
          %v1056 = vpop.f32.mrb[0].mxu0
          %v1057 = vadd.f32 0.0, %v1056
          %v1058 = vpop.f32.mrb[0].mxu0
          %1059 = vmatprep.mubr.f32.mxu0 0.0
          %1060 = vmatmul.mubr.f32.gmra.mrb[0].mxu0 %v926
          %v1061 = vpop.f32.mrb[0].mxu0
          %v1062 = vadd.f32 0.0, %v1061
          %v1063 = vpop.f32.mrb[0].mxu0
          %1064 = vmatprep.mubr.f32.mxu0 0.0
          %1065 = vmatmul.mubr.f32.gmra.mrb[0].mxu0 %v929
          %v1066 = vpop.f32.mrb[0].mxu0
          %v1067 = vadd.f32 0.0, %v1066
          %v1068 = vpop.f32.mrb[0].mxu0
          %1069 = vmatprep.mubr.f32.mxu0 0.0
          %1070 = vmatmul.mubr.f32.gmra.mrb[0].mxu0 %v932
          %v1071 = vpop.f32.mrb[0].mxu0
          %v1072 = vadd.f32 0.0, %v1071
          %v1073 = vpop.f32.mrb[0].mxu0
          %1074 = vmatprep.mubr.f32.mxu0 0.0
          %1075 = vmatmul.mubr.f32.gmra.mrb[0].mxu0 %v935
          %v1076 = vpop.f32.mrb[0].mxu0
          %v1077 = vadd.f32 0.0, %v1076
          %v1078 = vpop.f32.mrb[0].mxu0
          %1079 = vmatprep.mubr.f32.mxu0 0.0
          %1080 = vmatmul.mubr.f32.gmra.mrb[0].mxu0 %v938
          %v1081 = vpop.f32.mrb[0].mxu0
          %v1082 = vadd.f32 0.0, %v1081
          %v1083 = vpop.f32.mrb[0].mxu0
          %1084 = vdwg.mxu0
          %1085 = vmatprep.subr.mxu0 0.0
          %1086 = vmatpush1.msra.mxu0 %v714
          %1087 = vmatprep.subr.mxu0 0.0
          %1088 = vmatpush1.msra.mxu0 0.0
          %1089 = vmatprep.subr.mxu0 0.0
          %1090 = vmatpush1.msra.mxu0 0.0
          %1091 = vmatprep.subr.mxu0 0.0
          %1092 = vmatpush1.msra.mxu0 0.0
          %1093 = vmatprep.subr.mxu0 0.0
          %1094 = vmatpush1.msra.mxu0 0.0
          %1095 = vmatprep.subr.mxu0 0.0
          %1096 = vmatpush1.msra.mxu0 0.0
          %1097 = vmatprep.subr.mxu0 0.0
          %1098 = vmatpush1.msra.mxu0 0.0
          %1099 = vmatprep.subr.mxu0 0.0
          %1100 = vmatpush1.msra.mxu0 0.0
          %1101 = vmatprep.subr.mxu0 0.0
          %1102 = vmatpush1.msra.mxu0 0.0
          %1103 = vmatprep.subr.mxu0 0.0
          %1104 = vmatpush1.msra.mxu0 0.0
          %1105 = vmatprep.subr.mxu0 0.0
          %1106 = vmatpush1.msra.mxu0 0.0
          %1107 = vmatprep.subr.mxu0 0.0
          %1108 = vmatpush1.msra.mxu0 0.0
          %1109 = vmatprep.subr.mxu0 0.0
          %1110 = vmatpush1.msra.mxu0 0.0
          %1111 = vmatprep.subr.mxu0 0.0
          %1112 = vmatpush1.msra.mxu0 0.0
          %1113 = vmatprep.subr.mxu0 0.0
          %1114 = vmatpush1.msra.mxu0 0.0
          %1115 = vmatprep.subr.mxu0 0.0
          %1116 = vmatpush1.msra.mxu0 0.0
          %1117 = vmatprep.subr.mxu0 0.0
          %1118 = vmatpush1.msra.mxu0 0.0
          %1119 = vmatprep.subr.mxu0 0.0
          %1120 = vmatpush1.msra.mxu0 0.0
          %1121 = vmatprep.subr.mxu0 0.0
          %1122 = vmatpush1.msra.mxu0 0.0
          %1123 = vmatprep.subr.mxu0 0.0
          %1124 = vmatpush1.msra.mxu0 0.0
          %1125 = vmatprep.subr.mxu0 0.0
          %1126 = vmatpush1.msra.mxu0 0.0
          %1127 = vmatprep.subr.mxu0 0.0
          %1128 = vmatpush1.msra.mxu0 0.0
          %1129 = vmatprep.subr.mxu0 0.0
          %1130 = vmatpush1.msra.mxu0 0.0
          %1131 = vmatprep.subr.mxu0 0.0
          %1132 = vmatpush1.msra.mxu0 0.0
          %1133 = vmatprep.subr.mxu0 0.0
          %1134 = vmatpush1.msra.mxu0 0.0
          %1135 = vmatprep.subr.mxu0 0.0
          %1136 = vmatpush1.msra.mxu0 0.0
          %1137 = vmatprep.subr.mxu0 0.0
          %1138 = vmatpush1.msra.mxu0 0.0
          %1139 = vmatprep.subr.mxu0 0.0
          %1140 = vmatpush1.msra.mxu0 0.0
          %1141 = vmatprep.subr.mxu0 0.0
          %1142 = vmatpush1.msra.mxu0 0.0
          %1143 = vmatprep.subr.mxu0 0.0
          %1144 = vmatpush1.msra.mxu0 0.0
          %1145 = vmatprep.subr.mxu0 0.0
          %1146 = vmatpush1.msra.mxu0 0.0
          %1147 = vmatprep.subr.mxu0 0.0
          %1148 = vmatpush1.msra.mxu0 0.0
          %1149 = vmatprep.mubr.f32.mxu0 0.0
          %1150 = vmatmul.mubr.f32.gmra.mrb[0].mxu0 %v893
          %v1151 = vpop.f32.mrb[0].mxu0
          %v1152 = vadd.f32 0.0, %v1151
          %v1153 = vpop.f32.mrb[0].mxu0
          %1154 = vmatprep.mubr.f32.mxu0 0.0
          %1155 = vmatmul.mubr.f32.gmra.mrb[0].mxu0 %v896
          %v1156 = vpop.f32.mrb[0].mxu0
          %v1157 = vadd.f32 0.0, %v1156
          %v1158 = vpop.f32.mrb[0].mxu0
          %1159 = vmatprep.mubr.f32.mxu0 0.0
          %1160 = vmatmul.mubr.f32.gmra.mrb[0].mxu0 %v899
          %v1161 = vpop.f32.mrb[0].mxu0
          %v1162 = vadd.f32 0.0, %v1161
          %v1163 = vpop.f32.mrb[0].mxu0
          %1164 = vmatprep.mubr.f32.mxu0 0.0
          %1165 = vmatmul.mubr.f32.gmra.mrb[0].mxu0 %v902
          %v1166 = vpop.f32.mrb[0].mxu0
          %v1167 = vadd.f32 0.0, %v1166
          %v1168 = vpop.f32.mrb[0].mxu0
          %1169 = vmatprep.mubr.f32.mxu0 0.0
          %1170 = vmatmul.mubr.f32.gmra.mrb[0].mxu0 %v905
          %v1171 = vpop.f32.mrb[0].mxu0
          %v1172 = vadd.f32 0.0, %v1171
          %v1173 = vpop.f32.mrb[0].mxu0
          %1174 = vmatprep.mubr.f32.mxu0 0.0
          %1175 = vmatmul.mubr.f32.gmra.mrb[0].mxu0 %v908
          %v1176 = vpop.f32.mrb[0].mxu0
          %v1177 = vadd.f32 0.0, %v1176
          %v1178 = vpop.f32.mrb[0].mxu0
          %1179 = vmatprep.mubr.f32.mxu0 0.0
          %1180 = vmatmul.mubr.f32.gmra.mrb[0].mxu0 %v911
          %v1181 = vpop.f32.mrb[0].mxu0
          %v1182 = vadd.f32 0.0, %v1181
          %v1183 = vpop.f32.mrb[0].mxu0
          %1184 = vmatprep.mubr.f32.mxu0 0.0
          %1185 = vmatmul.mubr.f32.gmra.mrb[0].mxu0 %v914
          %v1186 = vpop.f32.mrb[0].mxu0
          %v1187 = vadd.f32 0.0, %v1186
          %v1188 = vpop.f32.mrb[0].mxu0
          %1189 = vmatprep.mubr.f32.mxu0 0.0
          %1190 = vmatmul.mubr.f32.gmra.mrb[0].mxu0 %v917
          %v1191 = vpop.f32.mrb[0].mxu0
          %v1192 = vadd.f32 0.0, %v1191
          %v1193 = vpop.f32.mrb[0].mxu0
          %1194 = vmatprep.mubr.f32.mxu0 0.0
          %1195 = vmatmul.mubr.f32.gmra.mrb[0].mxu0 %v920
          %v1196 = vpop.f32.mrb[0].mxu0
          %v1197 = vadd.f32 0.0, %v1196
          %v1198 = vpop.f32.mrb[0].mxu0
          %1199 = vmatprep.mubr.f32.mxu0 0.0
          %1200 = vmatmul.mubr.f32.gmra.mrb[0].mxu0 %v923
          %v1201 = vpop.f32.mrb[0].mxu0
          %v1202 = vadd.f32 0.0, %v1201
          %v1203 = vpop.f32.mrb[0].mxu0
          %1204 = vmatprep.mubr.f32.mxu0 0.0
          %1205 = vmatmul.mubr.f32.gmra.mrb[0].mxu0 %v926
          %v1206 = vpop.f32.mrb[0].mxu0
          %v1207 = vadd.f32 0.0, %v1206
          %v1208 = vpop.f32.mrb[0].mxu0
          %1209 = vmatprep.mubr.f32.mxu0 0.0
          %1210 = vmatmul.mubr.f32.gmra.mrb[0].mxu0 %v929
          %v1211 = vpop.f32.mrb[0].mxu0
          %v1212 = vadd.f32 0.0, %v1211
          %v1213 = vpop.f32.mrb[0].mxu0
          %1214 = vmatprep.mubr.f32.mxu0 0.0
          %1215 = vmatmul.mubr.f32.gmra.mrb[0].mxu0 %v932
          %v1216 = vpop.f32.mrb[0].mxu0
          %v1217 = vadd.f32 0.0, %v1216
          %v1218 = vpop.f32.mrb[0].mxu0
          %1219 = vmatprep.mubr.f32.mxu0 0.0
          %1220 = vmatmul.mubr.f32.gmra.mrb[0].mxu0 %v935
          %v1221 = vpop.f32.mrb[0].mxu0
          %v1222 = vadd.f32 0.0, %v1221
          %v1223 = vpop.f32.mrb[0].mxu0
          %1224 = vmatprep.mubr.f32.mxu0 0.0
          %1225 = vmatmul.mubr.f32.gmra.mrb[0].mxu0 %v938
          %v1226 = vpop.f32.mrb[0].mxu0
          %v1227 = vadd.f32 0.0, %v1226
          %v1228 = vpop.f32.mrb[0].mxu0
          %1229 = vdwg.mxu0
          %v1230 = vmul.f32 %v714, %v714
          %1231 = vmatprep.subr.mxu0 0.0
          %1232 = vmatpush1.msra.mxu0 %v1230
          %1233 = vmatprep.subr.mxu0 0.0
          %1234 = vmatpush1.msra.mxu0 0.0
          %1235 = vmatprep.subr.mxu0 0.0
          %1236 = vmatpush1.msra.mxu0 0.0
          %1237 = vmatprep.subr.mxu0 0.0
          %1238 = vmatpush1.msra.mxu0 0.0
          %1239 = vmatprep.subr.mxu0 0.0
          %1240 = vmatpush1.msra.mxu0 0.0
          %1241 = vmatprep.subr.mxu0 0.0
          %1242 = vmatpush1.msra.mxu0 0.0
          %1243 = vmatprep.subr.mxu0 0.0
          %1244 = vmatpush1.msra.mxu0 0.0
          %1245 = vmatprep.subr.mxu0 0.0
          %1246 = vmatpush1.msra.mxu0 0.0
          %1247 = vmatprep.subr.mxu0 0.0
          %1248 = vmatpush1.msra.mxu0 0.0
          %1249 = vmatprep.subr.mxu0 0.0
          %1250 = vmatpush1.msra.mxu0 0.0
          %1251 = vmatprep.subr.mxu0 0.0
          %1252 = vmatpush1.msra.mxu0 0.0
          %1253 = vmatprep.subr.mxu0 0.0
          %1254 = vmatpush1.msra.mxu0 0.0
          %1255 = vmatprep.subr.mxu0 0.0
          %1256 = vmatpush1.msra.mxu0 0.0
          %1257 = vmatprep.subr.mxu0 0.0
          %1258 = vmatpush1.msra.mxu0 0.0
          %1259 = vmatprep.subr.mxu0 0.0
          %1260 = vmatpush1.msra.mxu0 0.0
          %1261 = vmatprep.subr.mxu0 0.0
          %1262 = vmatpush1.msra.mxu0 0.0
          %1263 = vmatprep.subr.mxu0 0.0
          %1264 = vmatpush1.msra.mxu0 0.0
          %1265 = vmatprep.subr.mxu0 0.0
          %1266 = vmatpush1.msra.mxu0 0.0
          %1267 = vmatprep.subr.mxu0 0.0
          %1268 = vmatpush1.msra.mxu0 0.0
          %1269 = vmatprep.subr.mxu0 0.0
          %1270 = vmatpush1.msra.mxu0 0.0
          %1271 = vmatprep.subr.mxu0 0.0
          %1272 = vmatpush1.msra.mxu0 0.0
          %1273 = vmatprep.subr.mxu0 0.0
          %1274 = vmatpush1.msra.mxu0 0.0
          %1275 = vmatprep.subr.mxu0 0.0
          %1276 = vmatpush1.msra.mxu0 0.0
          %1277 = vmatprep.subr.mxu0 0.0
          %1278 = vmatpush1.msra.mxu0 0.0
          %1279 = vmatprep.subr.mxu0 0.0
          %1280 = vmatpush1.msra.mxu0 0.0
          %1281 = vmatprep.subr.mxu0 0.0
          %1282 = vmatpush1.msra.mxu0 0.0
          %1283 = vmatprep.subr.mxu0 0.0
          %1284 = vmatpush1.msra.mxu0 0.0
          %1285 = vmatprep.subr.mxu0 0.0
          %1286 = vmatpush1.msra.mxu0 0.0
          %1287 = vmatprep.subr.mxu0 0.0
          %1288 = vmatpush1.msra.mxu0 0.0
          %1289 = vmatprep.subr.mxu0 0.0
          %1290 = vmatpush1.msra.mxu0 0.0
          %1291 = vmatprep.subr.mxu0 0.0
          %1292 = vmatpush1.msra.mxu0 0.0
          %1293 = vmatprep.subr.mxu0 0.0
          %1294 = vmatpush1.msra.mxu0 0.0
          %1295 = vmatprep.mubr.f32.mxu0 0.0
          %1296 = vmatmul.mubr.f32.gmra.mrb[0].mxu0 %v893
          %v1297 = vpop.f32.mrb[0].mxu0
          %v1298 = vadd.f32 0.0, %v1297
          %v1299 = vpop.f32.mrb[0].mxu0
          %1300 = vmatprep.mubr.f32.mxu0 0.0
          %1301 = vmatmul.mubr.f32.gmra.mrb[0].mxu0 %v896
          %v1302 = vpop.f32.mrb[0].mxu0
          %v1303 = vadd.f32 0.0, %v1302
          %v1304 = vpop.f32.mrb[0].mxu0
          %1305 = vmatprep.mubr.f32.mxu0 0.0
          %1306 = vmatmul.mubr.f32.gmra.mrb[0].mxu0 %v899
          %v1307 = vpop.f32.mrb[0].mxu0
          %v1308 = vadd.f32 0.0, %v1307
          %v1309 = vpop.f32.mrb[0].mxu0
          %1310 = vmatprep.mubr.f32.mxu0 0.0
          %1311 = vmatmul.mubr.f32.gmra.mrb[0].mxu0 %v902
          %v1312 = vpop.f32.mrb[0].mxu0
          %v1313 = vadd.f32 0.0, %v1312
          %v1314 = vpop.f32.mrb[0].mxu0
          %1315 = vmatprep.mubr.f32.mxu0 0.0
          %1316 = vmatmul.mubr.f32.gmra.mrb[0].mxu0 %v905
          %v1317 = vpop.f32.mrb[0].mxu0
          %v1318 = vadd.f32 0.0, %v1317
          %v1319 = vpop.f32.mrb[0].mxu0
          %1320 = vmatprep.mubr.f32.mxu0 0.0
          %1321 = vmatmul.mubr.f32.gmra.mrb[0].mxu0 %v908
          %v1322 = vpop.f32.mrb[0].mxu0
          %v1323 = vadd.f32 0.0, %v1322
          %v1324 = vpop.f32.mrb[0].mxu0
          %1325 = vmatprep.mubr.f32.mxu0 0.0
          %1326 = vmatmul.mubr.f32.gmra.mrb[0].mxu0 %v911
          %v1327 = vpop.f32.mrb[0].mxu0
          %v1328 = vadd.f32 0.0, %v1327
          %v1329 = vpop.f32.mrb[0].mxu0
          %1330 = vmatprep.mubr.f32.mxu0 0.0
          %1331 = vmatmul.mubr.f32.gmra.mrb[0].mxu0 %v914
          %v1332 = vpop.f32.mrb[0].mxu0
          %v1333 = vadd.f32 0.0, %v1332
          %v1334 = vpop.f32.mrb[0].mxu0
          %1335 = vmatprep.mubr.f32.mxu0 0.0
          %1336 = vmatmul.mubr.f32.gmra.mrb[0].mxu0 %v917
          %v1337 = vpop.f32.mrb[0].mxu0
          %v1338 = vadd.f32 0.0, %v1337
          %v1339 = vpop.f32.mrb[0].mxu0
          %1340 = vmatprep.mubr.f32.mxu0 0.0
          %1341 = vmatmul.mubr.f32.gmra.mrb[0].mxu0 %v920
          %v1342 = vpop.f32.mrb[0].mxu0
          %v1343 = vadd.f32 0.0, %v1342
          %v1344 = vpop.f32.mrb[0].mxu0
          %1345 = vmatprep.mubr.f32.mxu0 0.0
          %1346 = vmatmul.mubr.f32.gmra.mrb[0].mxu0 %v923
          %v1347 = vpop.f32.mrb[0].mxu0
          %v1348 = vadd.f32 0.0, %v1347
          %v1349 = vpop.f32.mrb[0].mxu0
          %1350 = vmatprep.mubr.f32.mxu0 0.0
          %1351 = vmatmul.mubr.f32.gmra.mrb[0].mxu0 %v926
          %v1352 = vpop.f32.mrb[0].mxu0
          %v1353 = vadd.f32 0.0, %v1352
          %v1354 = vpop.f32.mrb[0].mxu0
          %1355 = vmatprep.mubr.f32.mxu0 0.0
          %1356 = vmatmul.mubr.f32.gmra.mrb[0].mxu0 %v929
          %v1357 = vpop.f32.mrb[0].mxu0
          %v1358 = vadd.f32 0.0, %v1357
          %v1359 = vpop.f32.mrb[0].mxu0
          %1360 = vmatprep.mubr.f32.mxu0 0.0
          %1361 = vmatmul.mubr.f32.gmra.mrb[0].mxu0 %v932
          %v1362 = vpop.f32.mrb[0].mxu0
          %v1363 = vadd.f32 0.0, %v1362
          %v1364 = vpop.f32.mrb[0].mxu0
          %1365 = vmatprep.mubr.f32.mxu0 0.0
          %1366 = vmatmul.mubr.f32.gmra.mrb[0].mxu0 %v935
          %v1367 = vpop.f32.mrb[0].mxu0
          %v1368 = vadd.f32 0.0, %v1367
          %v1369 = vpop.f32.mrb[0].mxu0
          %1370 = vmatprep.mubr.f32.mxu0 0.0
          %1371 = vmatmul.mubr.f32.gmra.mrb[0].mxu0 %v938
          %v1372 = vpop.f32.mrb[0].mxu0
          %v1373 = vadd.f32 0.0, %v1372
          %v1374 = vpop.f32.mrb[0].mxu0
          %1375 = vdwg.mxu0
          %vm1376 = vcmp.eq.f32.partialorder %v1007, 0.0
          %vm1377 = vcmp.eq.f32.partialorder %v1012, 0.0
          %vm1378 = vcmp.eq.f32.partialorder %v1017, 0.0
          %vm1379 = vcmp.eq.f32.partialorder %v1022, 0.0
          %vm1380 = vcmp.eq.f32.partialorder %v1027, 0.0
          %vm1381 = vcmp.eq.f32.partialorder %v1032, 0.0
          %vm1382 = vcmp.eq.f32.partialorder %v1037, 0.0
          %vm1383 = vcmp.eq.f32.partialorder %v1042, 0.0
          %vm1384 = vcmp.eq.f32.partialorder %v1047, 0.0
          %vm1385 = vcmp.eq.f32.partialorder %v1052, 0.0
          %vm1386 = vcmp.eq.f32.partialorder %v1057, 0.0
          %vm1387 = vcmp.eq.f32.partialorder %v1062, 0.0
          %vm1388 = vcmp.eq.f32.partialorder %v1067, 0.0
          %vm1389 = vcmp.eq.f32.partialorder %v1072, 0.0
          %vm1390 = vcmp.eq.f32.partialorder %v1077, 0.0
          %vm1391 = vcmp.eq.f32.partialorder %v1082, 0.0
          %v1392 = vsel %vm1376, 1.0, %v1007
          %v1393 = vsel %vm1377, 1.0, %v1012
          %v1394 = vsel %vm1378, 1.0, %v1017
          %v1395 = vsel %vm1379, 1.0, %v1022
          %v1396 = vsel %vm1380, 1.0, %v1027
          %v1397 = vsel %vm1381, 1.0, %v1032
          %v1398 = vsel %vm1382, 1.0, %v1037
          %v1399 = vsel %vm1383, 1.0, %v1042
          %v1400 = vsel %vm1384, 1.0, %v1047
          %v1401 = vsel %vm1385, 1.0, %v1052
          %v1402 = vsel %vm1386, 1.0, %v1057
          %v1403 = vsel %vm1387, 1.0, %v1062
          %v1404 = vsel %vm1388, 1.0, %v1067
          %v1405 = vsel %vm1389, 1.0, %v1072
          %v1406 = vsel %vm1390, 1.0, %v1077
          %v1407 = vsel %vm1391, 1.0, %v1082
          %1409 = vset.pattern.permute.xlu0 0
          %1410 = vperm.xlu0 %1409, %v1392
          %v1411 = vpop.permute.xlu0 %1410
          %1414 = vset.pattern.permute.xlu0 0
          %1415 = vperm.xlu0 %1414, %v1393
          %v1416 = vpop.permute.xlu0 %1415
          %1419 = vset.pattern.permute.xlu0 0
          %1420 = vperm.xlu0 %1419, %v1394
          %v1421 = vpop.permute.xlu0 %1420
          %1424 = vset.pattern.permute.xlu0 0
          %1425 = vperm.xlu0 %1424, %v1395
          %v1426 = vpop.permute.xlu0 %1425
          %1429 = vset.pattern.permute.xlu0 0
          %1430 = vperm.xlu0 %1429, %v1396
          %v1431 = vpop.permute.xlu0 %1430
          %1434 = vset.pattern.permute.xlu0 0
          %1435 = vperm.xlu0 %1434, %v1397
          %v1436 = vpop.permute.xlu0 %1435
          %1439 = vset.pattern.permute.xlu0 0
          %1440 = vperm.xlu0 %1439, %v1398
          %v1441 = vpop.permute.xlu0 %1440
          %1444 = vset.pattern.permute.xlu0 0
          %1445 = vperm.xlu0 %1444, %v1399
          %v1446 = vpop.permute.xlu0 %1445
          %1449 = vset.pattern.permute.xlu0 0
          %1450 = vperm.xlu0 %1449, %v1400
          %v1451 = vpop.permute.xlu0 %1450
          %1454 = vset.pattern.permute.xlu0 0
          %1455 = vperm.xlu0 %1454, %v1401
          %v1456 = vpop.permute.xlu0 %1455
          %1459 = vset.pattern.permute.xlu0 0
          %1460 = vperm.xlu0 %1459, %v1402
          %v1461 = vpop.permute.xlu0 %1460
          %1464 = vset.pattern.permute.xlu0 0
          %1465 = vperm.xlu0 %1464, %v1403
          %v1466 = vpop.permute.xlu0 %1465
          %1469 = vset.pattern.permute.xlu0 0
          %1470 = vperm.xlu0 %1469, %v1404
          %v1471 = vpop.permute.xlu0 %1470
          %1474 = vset.pattern.permute.xlu0 0
          %1475 = vperm.xlu0 %1474, %v1405
          %v1476 = vpop.permute.xlu0 %1475
          %1479 = vset.pattern.permute.xlu0 0
          %1480 = vperm.xlu0 %1479, %v1406
          %v1481 = vpop.permute.xlu0 %1480
          %1484 = vset.pattern.permute.xlu0 0
          %1485 = vperm.xlu0 %1484, %v1407
          %v1486 = vpop.permute.xlu0 %1485
          %v1488 = vrcp.pop %v1411
          %v1489 = vmul.f32 %v1152, %v1488
          %v1490 = vrcp.pop %v1416
          %v1491 = vmul.f32 %v1157, %v1490
          %v1492 = vrcp.pop %v1421
          %v1493 = vmul.f32 %v1162, %v1492
          %v1494 = vrcp.pop %v1426
          %v1495 = vmul.f32 %v1167, %v1494
          %v1496 = vrcp.pop %v1431
          %v1497 = vmul.f32 %v1172, %v1496
          %v1498 = vrcp.pop %v1436
          %v1499 = vmul.f32 %v1177, %v1498
          %v1500 = vrcp.pop %v1441
          %v1501 = vmul.f32 %v1182, %v1500
          %v1502 = vrcp.pop %v1446
          %v1503 = vmul.f32 %v1187, %v1502
          %v1504 = vrcp.pop %v1451
          %v1505 = vmul.f32 %v1192, %v1504
          %v1506 = vrcp.pop %v1456
          %v1507 = vmul.f32 %v1197, %v1506
          %v1508 = vrcp.pop %v1461
          %v1509 = vmul.f32 %v1202, %v1508
          %v1510 = vrcp.pop %v1466
          %v1511 = vmul.f32 %v1207, %v1510
          %v1512 = vrcp.pop %v1471
          %v1513 = vmul.f32 %v1212, %v1512
          %v1514 = vrcp.pop %v1476
          %v1515 = vmul.f32 %v1217, %v1514
          %v1516 = vrcp.pop %v1481
          %v1517 = vmul.f32 %v1222, %v1516
          %v1518 = vrcp.pop %v1486
          %v1519 = vmul.f32 %v1227, %v1518
          %v1520 = vmul.f32 %v1489, 2.0
          %v1521 = vmul.f32 %v1491, 2.0
          %v1522 = vmul.f32 %v1493, 2.0
          %v1523 = vmul.f32 %v1495, 2.0
          %v1524 = vmul.f32 %v1497, 2.0
          %v1525 = vmul.f32 %v1499, 2.0
          %v1526 = vmul.f32 %v1501, 2.0
          %v1527 = vmul.f32 %v1503, 2.0
          %v1528 = vmul.f32 %v1505, 2.0
          %v1529 = vmul.f32 %v1507, 2.0
          %v1530 = vmul.f32 %v1509, 2.0
          %v1531 = vmul.f32 %v1511, 2.0
          %v1532 = vmul.f32 %v1513, 2.0
          %v1533 = vmul.f32 %v1515, 2.0
          %v1534 = vmul.f32 %v1517, 2.0
          %v1535 = vmul.f32 %v1519, 2.0
          %v1536 = vmul.f32 %v1520, %v1152
          %v1537 = vmul.f32 %v1521, %v1157
          %v1538 = vmul.f32 %v1522, %v1162
          %v1539 = vmul.f32 %v1523, %v1167
          %v1540 = vmul.f32 %v1524, %v1172
          %v1541 = vmul.f32 %v1525, %v1177
          %v1542 = vmul.f32 %v1526, %v1182
          %v1543 = vmul.f32 %v1527, %v1187
          %v1544 = vmul.f32 %v1528, %v1192
          %v1545 = vmul.f32 %v1529, %v1197
          %v1546 = vmul.f32 %v1530, %v1202
          %v1547 = vmul.f32 %v1531, %v1207
          %v1548 = vmul.f32 %v1532, %v1212
          %v1549 = vmul.f32 %v1533, %v1217
          %v1550 = vmul.f32 %v1534, %v1222
          %v1551 = vmul.f32 %v1535, %v1227
          %v1552 = vsub.f32 %v1298, %v1536
          %v1553 = vsub.f32 %v1303, %v1537
          %v1554 = vsub.f32 %v1308, %v1538
          %v1555 = vsub.f32 %v1313, %v1539
          %v1556 = vsub.f32 %v1318, %v1540
          %v1557 = vsub.f32 %v1323, %v1541
          %v1558 = vsub.f32 %v1328, %v1542
          %v1559 = vsub.f32 %v1333, %v1543
          %v1560 = vsub.f32 %v1338, %v1544
          %v1561 = vsub.f32 %v1343, %v1545
          %v1562 = vsub.f32 %v1348, %v1546
          %v1563 = vsub.f32 %v1353, %v1547
          %v1564 = vsub.f32 %v1358, %v1548
          %v1565 = vsub.f32 %v1363, %v1549
          %v1566 = vsub.f32 %v1368, %v1550
          %v1567 = vsub.f32 %v1373, %v1551
          %1569 = vset.pattern.permute.xlu0 0
          %1570 = vperm.xlu0 %1569, %v1007
          %v1571 = vpop.permute.xlu0 %1570
          %1574 = vset.pattern.permute.xlu0 0
          %1575 = vperm.xlu0 %1574, %v1012
          %v1576 = vpop.permute.xlu0 %1575
          %1579 = vset.pattern.permute.xlu0 0
          %1580 = vperm.xlu0 %1579, %v1017
          %v1581 = vpop.permute.xlu0 %1580
          %1584 = vset.pattern.permute.xlu0 0
          %1585 = vperm.xlu0 %1584, %v1022
          %v1586 = vpop.permute.xlu0 %1585
          %1589 = vset.pattern.permute.xlu0 0
          %1590 = vperm.xlu0 %1589, %v1027
          %v1591 = vpop.permute.xlu0 %1590
          %1594 = vset.pattern.permute.xlu0 0
          %1595 = vperm.xlu0 %1594, %v1032
          %v1596 = vpop.permute.xlu0 %1595
          %1599 = vset.pattern.permute.xlu0 0
          %1600 = vperm.xlu0 %1599, %v1037
          %v1601 = vpop.permute.xlu0 %1600
          %1604 = vset.pattern.permute.xlu0 0
          %1605 = vperm.xlu0 %1604, %v1042
          %v1606 = vpop.permute.xlu0 %1605
          %1609 = vset.pattern.permute.xlu0 0
          %1610 = vperm.xlu0 %1609, %v1047
          %v1611 = vpop.permute.xlu0 %1610
          %1614 = vset.pattern.permute.xlu0 0
          %1615 = vperm.xlu0 %1614, %v1052
          %v1616 = vpop.permute.xlu0 %1615
          %1619 = vset.pattern.permute.xlu0 0
          %1620 = vperm.xlu0 %1619, %v1057
          %v1621 = vpop.permute.xlu0 %1620
          %1624 = vset.pattern.permute.xlu0 0
          %1625 = vperm.xlu0 %1624, %v1062
          %v1626 = vpop.permute.xlu0 %1625
          %1629 = vset.pattern.permute.xlu0 0
          %1630 = vperm.xlu0 %1629, %v1067
          %v1631 = vpop.permute.xlu0 %1630
          %1634 = vset.pattern.permute.xlu0 0
          %1635 = vperm.xlu0 %1634, %v1072
          %v1636 = vpop.permute.xlu0 %1635
          %1639 = vset.pattern.permute.xlu0 0
          %1640 = vperm.xlu0 %1639, %v1077
          %v1641 = vpop.permute.xlu0 %1640
          %1644 = vset.pattern.permute.xlu0 0
          %1645 = vperm.xlu0 %1644, %v1082
          %v1646 = vpop.permute.xlu0 %1645
          %v1648 = vmul.f32 %v1571, %v1489
          %v1649 = vmul.f32 %v1576, %v1491
          %v1650 = vmul.f32 %v1581, %v1493
          %v1651 = vmul.f32 %v1586, %v1495
          %v1652 = vmul.f32 %v1591, %v1497
          %v1653 = vmul.f32 %v1596, %v1499
          %v1654 = vmul.f32 %v1601, %v1501
          %v1655 = vmul.f32 %v1606, %v1503
          %v1656 = vmul.f32 %v1611, %v1505
          %v1657 = vmul.f32 %v1616, %v1507
          %v1658 = vmul.f32 %v1621, %v1509
          %v1659 = vmul.f32 %v1626, %v1511
          %v1660 = vmul.f32 %v1631, %v1513
          %v1661 = vmul.f32 %v1636, %v1515
          %v1662 = vmul.f32 %v1641, %v1517
          %v1663 = vmul.f32 %v1646, %v1519
          %v1664 = vmul.f32 %v1648, %v1489
          %v1665 = vmul.f32 %v1649, %v1491
          %v1666 = vmul.f32 %v1650, %v1493
          %v1667 = vmul.f32 %v1651, %v1495
          %v1668 = vmul.f32 %v1652, %v1497
          %v1669 = vmul.f32 %v1653, %v1499
          %v1670 = vmul.f32 %v1654, %v1501
          %v1671 = vmul.f32 %v1655, %v1503
          %v1672 = vmul.f32 %v1656, %v1505
          %v1673 = vmul.f32 %v1657, %v1507
          %v1674 = vmul.f32 %v1658, %v1509
          %v1675 = vmul.f32 %v1659, %v1511
          %v1676 = vmul.f32 %v1660, %v1513
          %v1677 = vmul.f32 %v1661, %v1515
          %v1678 = vmul.f32 %v1662, %v1517
          %v1679 = vmul.f32 %v1663, %v1519
          %v1680 = vadd.f32 %v1552, %v1664
          %v1681 = vadd.f32 %v1553, %v1665
          %v1682 = vadd.f32 %v1554, %v1666
          %v1683 = vadd.f32 %v1555, %v1667
          %v1684 = vadd.f32 %v1556, %v1668
          %v1685 = vadd.f32 %v1557, %v1669
          %v1686 = vadd.f32 %v1558, %v1670
          %v1687 = vadd.f32 %v1559, %v1671
          %v1688 = vadd.f32 %v1560, %v1672
          %v1689 = vadd.f32 %v1561, %v1673
          %v1690 = vadd.f32 %v1562, %v1674
          %v1691 = vadd.f32 %v1563, %v1675
          %v1692 = vadd.f32 %v1564, %v1676
          %v1693 = vadd.f32 %v1565, %v1677
          %v1694 = vadd.f32 %v1566, %v1678
          %v1695 = vadd.f32 %v1567, %v1679
          %v1696 = vmul.f32 %v1680, %v1488
          %v1697 = vmul.f32 %v1681, %v1490
          %v1698 = vmul.f32 %v1682, %v1492
          %v1699 = vmul.f32 %v1683, %v1494
          %v1700 = vmul.f32 %v1684, %v1496
          %v1701 = vmul.f32 %v1685, %v1498
          %v1702 = vmul.f32 %v1686, %v1500
          %v1703 = vmul.f32 %v1687, %v1502
          %v1704 = vmul.f32 %v1688, %v1504
          %v1705 = vmul.f32 %v1689, %v1506
          %v1706 = vmul.f32 %v1690, %v1508
          %v1707 = vmul.f32 %v1691, %v1510
          %v1708 = vmul.f32 %v1692, %v1512
          %v1709 = vmul.f32 %v1693, %v1514
          %v1710 = vmul.f32 %v1694, %v1516
          %v1711 = vmul.f32 %v1695, %v1518
          %v1712 = vadd.f32 %v1007, %v764
          %v1713 = vadd.f32 %v1012, %v765
          %v1714 = vadd.f32 %v1017, %v766
          %v1715 = vadd.f32 %v1022, %v767
          %v1716 = vadd.f32 %v1027, %v768
          %v1717 = vadd.f32 %v1032, %v769
          %v1718 = vadd.f32 %v1037, %v770
          %v1719 = vadd.f32 %v1042, %v771
          %v1720 = vadd.f32 %v1047, %v772
          %v1721 = vadd.f32 %v1052, %v773
          %v1722 = vadd.f32 %v1057, %v774
          %v1723 = vadd.f32 %v1062, %v775
          %v1724 = vadd.f32 %v1067, %v776
          %v1725 = vadd.f32 %v1072, %v777
          %v1726 = vadd.f32 %v1077, %v778
          %v1727 = vadd.f32 %v1082, %v779
          %vm1728 = vcmp.eq.f32.partialorder %v1712, 0.0
          %vm1729 = vcmp.eq.f32.partialorder %v1713, 0.0
          %vm1730 = vcmp.eq.f32.partialorder %v1714, 0.0
          %vm1731 = vcmp.eq.f32.partialorder %v1715, 0.0
          %vm1732 = vcmp.eq.f32.partialorder %v1716, 0.0
          %vm1733 = vcmp.eq.f32.partialorder %v1717, 0.0
          %vm1734 = vcmp.eq.f32.partialorder %v1718, 0.0
          %vm1735 = vcmp.eq.f32.partialorder %v1719, 0.0
          %vm1736 = vcmp.eq.f32.partialorder %v1720, 0.0
          %vm1737 = vcmp.eq.f32.partialorder %v1721, 0.0
          %vm1738 = vcmp.eq.f32.partialorder %v1722, 0.0
          %vm1739 = vcmp.eq.f32.partialorder %v1723, 0.0
          %vm1740 = vcmp.eq.f32.partialorder %v1724, 0.0
          %vm1741 = vcmp.eq.f32.partialorder %v1725, 0.0
          %vm1742 = vcmp.eq.f32.partialorder %v1726, 0.0
          %vm1743 = vcmp.eq.f32.partialorder %v1727, 0.0
          %v1744 = vsel %vm1728, 1.0, %v1712
          %v1745 = vsel %vm1729, 1.0, %v1713
          %v1746 = vsel %vm1730, 1.0, %v1714
          %v1747 = vsel %vm1731, 1.0, %v1715
          %v1748 = vsel %vm1732, 1.0, %v1716
          %v1749 = vsel %vm1733, 1.0, %v1717
          %v1750 = vsel %vm1734, 1.0, %v1718
          %v1751 = vsel %vm1735, 1.0, %v1719
          %v1752 = vsel %vm1736, 1.0, %v1720
          %v1753 = vsel %vm1737, 1.0, %v1721
          %v1754 = vsel %vm1738, 1.0, %v1722
          %v1755 = vsel %vm1739, 1.0, %v1723
          %v1756 = vsel %vm1740, 1.0, %v1724
          %v1757 = vsel %vm1741, 1.0, %v1725
          %v1758 = vsel %vm1742, 1.0, %v1726
          %v1759 = vsel %vm1743, 1.0, %v1727
          %v1760 = vrcp.pop %v1744
          %v1761 = vmul.f32 %v1007, %v1760
          %v1762 = vrcp.pop %v1745
          %v1763 = vmul.f32 %v1012, %v1762
          %v1764 = vrcp.pop %v1746
          %v1765 = vmul.f32 %v1017, %v1764
          %v1766 = vrcp.pop %v1747
          %v1767 = vmul.f32 %v1022, %v1766
          %v1768 = vrcp.pop %v1748
          %v1769 = vmul.f32 %v1027, %v1768
          %v1770 = vrcp.pop %v1749
          %v1771 = vmul.f32 %v1032, %v1770
          %v1772 = vrcp.pop %v1750
          %v1773 = vmul.f32 %v1037, %v1772
          %v1774 = vrcp.pop %v1751
          %v1775 = vmul.f32 %v1042, %v1774
          %v1776 = vrcp.pop %v1752
          %v1777 = vmul.f32 %v1047, %v1776
          %v1778 = vrcp.pop %v1753
          %v1779 = vmul.f32 %v1052, %v1778
          %v1780 = vrcp.pop %v1754
          %v1781 = vmul.f32 %v1057, %v1780
          %v1782 = vrcp.pop %v1755
          %v1783 = vmul.f32 %v1062, %v1782
          %v1784 = vrcp.pop %v1756
          %v1785 = vmul.f32 %v1067, %v1784
          %v1786 = vrcp.pop %v1757
          %v1787 = vmul.f32 %v1072, %v1786
          %v1788 = vrcp.pop %v1758
          %v1789 = vmul.f32 %v1077, %v1788
          %v1790 = vrcp.pop %v1759
          %v1791 = vmul.f32 %v1082, %v1790
          %v1792 = vsel %vm1728, 0.0, %v1761
          %v1793 = vsel %vm1729, 0.0, %v1763
          %v1794 = vsel %vm1730, 0.0, %v1765
          %v1795 = vsel %vm1731, 0.0, %v1767
          %v1796 = vsel %vm1732, 0.0, %v1769
          %v1797 = vsel %vm1733, 0.0, %v1771
          %v1798 = vsel %vm1734, 0.0, %v1773
          %v1799 = vsel %vm1735, 0.0, %v1775
          %v1800 = vsel %vm1736, 0.0, %v1777
          %v1801 = vsel %vm1737, 0.0, %v1779
          %v1802 = vsel %vm1738, 0.0, %v1781
          %v1803 = vsel %vm1739, 0.0, %v1783
          %v1804 = vsel %vm1740, 0.0, %v1785
          %v1805 = vsel %vm1741, 0.0, %v1787
          %v1806 = vsel %vm1742, 0.0, %v1789
          %v1807 = vsel %vm1743, 0.0, %v1791
          %v1808 = vsub.f32 1.0, %v1792
          %v1809 = vsub.f32 1.0, %v1793
          %v1810 = vsub.f32 1.0, %v1794
          %v1811 = vsub.f32 1.0, %v1795
          %v1812 = vsub.f32 1.0, %v1796
          %v1813 = vsub.f32 1.0, %v1797
          %v1814 = vsub.f32 1.0, %v1798
          %v1815 = vsub.f32 1.0, %v1799
          %v1816 = vsub.f32 1.0, %v1800
          %v1817 = vsub.f32 1.0, %v1801
          %v1818 = vsub.f32 1.0, %v1802
          %v1819 = vsub.f32 1.0, %v1803
          %v1820 = vsub.f32 1.0, %v1804
          %v1821 = vsub.f32 1.0, %v1805
          %v1822 = vsub.f32 1.0, %v1806
          %v1823 = vsub.f32 1.0, %v1807
          %1825 = vset.pattern.permute.xlu0 0
          %1826 = vperm.xlu0 %1825, %v1808
          %v1827 = vpop.permute.xlu0 %1826
          %1830 = vset.pattern.permute.xlu0 0
          %1831 = vperm.xlu0 %1830, %v1809
          %v1832 = vpop.permute.xlu0 %1831
          %1835 = vset.pattern.permute.xlu0 0
          %1836 = vperm.xlu0 %1835, %v1810
          %v1837 = vpop.permute.xlu0 %1836
          %1840 = vset.pattern.permute.xlu0 0
          %1841 = vperm.xlu0 %1840, %v1811
          %v1842 = vpop.permute.xlu0 %1841
          %1845 = vset.pattern.permute.xlu0 0
          %1846 = vperm.xlu0 %1845, %v1812
          %v1847 = vpop.permute.xlu0 %1846
          %1850 = vset.pattern.permute.xlu0 0
          %1851 = vperm.xlu0 %1850, %v1813
          %v1852 = vpop.permute.xlu0 %1851
          %1855 = vset.pattern.permute.xlu0 0
          %1856 = vperm.xlu0 %1855, %v1814
          %v1857 = vpop.permute.xlu0 %1856
          %1860 = vset.pattern.permute.xlu0 0
          %1861 = vperm.xlu0 %1860, %v1815
          %v1862 = vpop.permute.xlu0 %1861
          %1865 = vset.pattern.permute.xlu0 0
          %1866 = vperm.xlu0 %1865, %v1816
          %v1867 = vpop.permute.xlu0 %1866
          %1870 = vset.pattern.permute.xlu0 0
          %1871 = vperm.xlu0 %1870, %v1817
          %v1872 = vpop.permute.xlu0 %1871
          %1875 = vset.pattern.permute.xlu0 0
          %1876 = vperm.xlu0 %1875, %v1818
          %v1877 = vpop.permute.xlu0 %1876
          %1880 = vset.pattern.permute.xlu0 0
          %1881 = vperm.xlu0 %1880, %v1819
          %v1882 = vpop.permute.xlu0 %1881
          %1885 = vset.pattern.permute.xlu0 0
          %1886 = vperm.xlu0 %1885, %v1820
          %v1887 = vpop.permute.xlu0 %1886
          %1890 = vset.pattern.permute.xlu0 0
          %1891 = vperm.xlu0 %1890, %v1821
          %v1892 = vpop.permute.xlu0 %1891
          %1895 = vset.pattern.permute.xlu0 0
          %1896 = vperm.xlu0 %1895, %v1822
          %v1897 = vpop.permute.xlu0 %1896
          %1900 = vset.pattern.permute.xlu0 0
          %1901 = vperm.xlu0 %1900, %v1823
          %v1902 = vpop.permute.xlu0 %1901
          %v1904 = vmul.f32 %v748, %v1827
          %v1905 = vmul.f32 %v749, %v1832
          %v1906 = vmul.f32 %v750, %v1837
          %v1907 = vmul.f32 %v751, %v1842
          %v1908 = vmul.f32 %v752, %v1847
          %v1909 = vmul.f32 %v753, %v1852
          %v1910 = vmul.f32 %v754, %v1857
          %v1911 = vmul.f32 %v755, %v1862
          %v1912 = vmul.f32 %v756, %v1867
          %v1913 = vmul.f32 %v757, %v1872
          %v1914 = vmul.f32 %v758, %v1877
          %v1915 = vmul.f32 %v759, %v1882
          %v1916 = vmul.f32 %v760, %v1887
          %v1917 = vmul.f32 %v761, %v1892
          %v1918 = vmul.f32 %v762, %v1897
          %v1919 = vmul.f32 %v763, %v1902
          %1921 = vset.pattern.permute.xlu0 0
          %1922 = vperm.xlu0 %1921, %v1792
          %v1923 = vpop.permute.xlu0 %1922
          %1926 = vset.pattern.permute.xlu0 0
          %1927 = vperm.xlu0 %1926, %v1793
          %v1928 = vpop.permute.xlu0 %1927
          %1931 = vset.pattern.permute.xlu0 0
          %1932 = vperm.xlu0 %1931, %v1794
          %v1933 = vpop.permute.xlu0 %1932
          %1936 = vset.pattern.permute.xlu0 0
          %1937 = vperm.xlu0 %1936, %v1795
          %v1938 = vpop.permute.xlu0 %1937
          %1941 = vset.pattern.permute.xlu0 0
          %1942 = vperm.xlu0 %1941, %v1796
          %v1943 = vpop.permute.xlu0 %1942
          %1946 = vset.pattern.permute.xlu0 0
          %1947 = vperm.xlu0 %1946, %v1797
          %v1948 = vpop.permute.xlu0 %1947
          %1951 = vset.pattern.permute.xlu0 0
          %1952 = vperm.xlu0 %1951, %v1798
          %v1953 = vpop.permute.xlu0 %1952
          %1956 = vset.pattern.permute.xlu0 0
          %1957 = vperm.xlu0 %1956, %v1799
          %v1958 = vpop.permute.xlu0 %1957
          %1961 = vset.pattern.permute.xlu0 0
          %1962 = vperm.xlu0 %1961, %v1800
          %v1963 = vpop.permute.xlu0 %1962
          %1966 = vset.pattern.permute.xlu0 0
          %1967 = vperm.xlu0 %1966, %v1801
          %v1968 = vpop.permute.xlu0 %1967
          %1971 = vset.pattern.permute.xlu0 0
          %1972 = vperm.xlu0 %1971, %v1802
          %v1973 = vpop.permute.xlu0 %1972
          %1976 = vset.pattern.permute.xlu0 0
          %1977 = vperm.xlu0 %1976, %v1803
          %v1978 = vpop.permute.xlu0 %1977
          %1981 = vset.pattern.permute.xlu0 0
          %1982 = vperm.xlu0 %1981, %v1804
          %v1983 = vpop.permute.xlu0 %1982
          %1986 = vset.pattern.permute.xlu0 0
          %1987 = vperm.xlu0 %1986, %v1805
          %v1988 = vpop.permute.xlu0 %1987
          %1991 = vset.pattern.permute.xlu0 0
          %1992 = vperm.xlu0 %1991, %v1806
          %v1993 = vpop.permute.xlu0 %1992
          %1996 = vset.pattern.permute.xlu0 0
          %1997 = vperm.xlu0 %1996, %v1807
          %v1998 = vpop.permute.xlu0 %1997
          %v2000 = vmul.f32 %v1696, %v1923
          %v2001 = vmul.f32 %v1697, %v1928
          %v2002 = vmul.f32 %v1698, %v1933
          %v2003 = vmul.f32 %v1699, %v1938
          %v2004 = vmul.f32 %v1700, %v1943
          %v2005 = vmul.f32 %v1701, %v1948
          %v2006 = vmul.f32 %v1702, %v1953
          %v2007 = vmul.f32 %v1703, %v1958
          %v2008 = vmul.f32 %v1704, %v1963
          %v2009 = vmul.f32 %v1705, %v1968
          %v2010 = vmul.f32 %v1706, %v1973
          %v2011 = vmul.f32 %v1707, %v1978
          %v2012 = vmul.f32 %v1708, %v1983
          %v2013 = vmul.f32 %v1709, %v1988
          %v2014 = vmul.f32 %v1710, %v1993
          %v2015 = vmul.f32 %v1711, %v1998
          %v2016 = vadd.f32 %v1904, %v2000
          %v2017 = vadd.f32 %v1905, %v2001
          %v2018 = vadd.f32 %v1906, %v2002
          %v2019 = vadd.f32 %v1907, %v2003
          %v2020 = vadd.f32 %v1908, %v2004
          %v2021 = vadd.f32 %v1909, %v2005
          %v2022 = vadd.f32 %v1910, %v2006
          %v2023 = vadd.f32 %v1911, %v2007
          %v2024 = vadd.f32 %v1912, %v2008
          %v2025 = vadd.f32 %v1913, %v2009
          %v2026 = vadd.f32 %v1914, %v2010
          %v2027 = vadd.f32 %v1915, %v2011
          %v2028 = vadd.f32 %v1916, %v2012
          %v2029 = vadd.f32 %v1917, %v2013
          %v2030 = vadd.f32 %v1918, %v2014
          %v2031 = vadd.f32 %v1919, %v2015
          %v2032 = vmul.f32 %v1792, %v1808
          %v2033 = vmul.f32 %v1793, %v1809
          %v2034 = vmul.f32 %v1794, %v1810
          %v2035 = vmul.f32 %v1795, %v1811
          %v2036 = vmul.f32 %v1796, %v1812
          %v2037 = vmul.f32 %v1797, %v1813
          %v2038 = vmul.f32 %v1798, %v1814
          %v2039 = vmul.f32 %v1799, %v1815
          %v2040 = vmul.f32 %v1800, %v1816
          %v2041 = vmul.f32 %v1801, %v1817
          %v2042 = vmul.f32 %v1802, %v1818
          %v2043 = vmul.f32 %v1803, %v1819
          %v2044 = vmul.f32 %v1804, %v1820
          %v2045 = vmul.f32 %v1805, %v1821
          %v2046 = vmul.f32 %v1806, %v1822
          %v2047 = vmul.f32 %v1807, %v1823
          %v2048 = vsub.f32 %v732, %v1489
          %v2049 = vsub.f32 %v733, %v1491
          %v2050 = vsub.f32 %v734, %v1493
          %v2051 = vsub.f32 %v735, %v1495
          %v2052 = vsub.f32 %v736, %v1497
          %v2053 = vsub.f32 %v737, %v1499
          %v2054 = vsub.f32 %v738, %v1501
          %v2055 = vsub.f32 %v739, %v1503
          %v2056 = vsub.f32 %v740, %v1505
          %v2057 = vsub.f32 %v741, %v1507
          %v2058 = vsub.f32 %v742, %v1509
          %v2059 = vsub.f32 %v743, %v1511
          %v2060 = vsub.f32 %v744, %v1513
          %v2061 = vsub.f32 %v745, %v1515
          %v2062 = vsub.f32 %v746, %v1517
          %v2063 = vsub.f32 %v747, %v1519
          %v2064 = vmul.f32 %v2048, %v2048
          %v2065 = vmul.f32 %v2049, %v2049
          %v2066 = vmul.f32 %v2050, %v2050
          %v2067 = vmul.f32 %v2051, %v2051
          %v2068 = vmul.f32 %v2052, %v2052
          %v2069 = vmul.f32 %v2053, %v2053
          %v2070 = vmul.f32 %v2054, %v2054
          %v2071 = vmul.f32 %v2055, %v2055
          %v2072 = vmul.f32 %v2056, %v2056
          %v2073 = vmul.f32 %v2057, %v2057
          %v2074 = vmul.f32 %v2058, %v2058
          %v2075 = vmul.f32 %v2059, %v2059
          %v2076 = vmul.f32 %v2060, %v2060
          %v2077 = vmul.f32 %v2061, %v2061
          %v2078 = vmul.f32 %v2062, %v2062
          %v2079 = vmul.f32 %v2063, %v2063
          %2081 = vset.pattern.permute.xlu0 0
          %2082 = vperm.xlu0 %2081, %v2032
          %v2083 = vpop.permute.xlu0 %2082
          %2086 = vset.pattern.permute.xlu0 0
          %2087 = vperm.xlu0 %2086, %v2033
          %v2088 = vpop.permute.xlu0 %2087
          %2091 = vset.pattern.permute.xlu0 0
          %2092 = vperm.xlu0 %2091, %v2034
          %v2093 = vpop.permute.xlu0 %2092
          %2096 = vset.pattern.permute.xlu0 0
          %2097 = vperm.xlu0 %2096, %v2035
          %v2098 = vpop.permute.xlu0 %2097
          %2101 = vset.pattern.permute.xlu0 0
          %2102 = vperm.xlu0 %2101, %v2036
          %v2103 = vpop.permute.xlu0 %2102
          %2106 = vset.pattern.permute.xlu0 0
          %2107 = vperm.xlu0 %2106, %v2037
          %v2108 = vpop.permute.xlu0 %2107
          %2111 = vset.pattern.permute.xlu0 0
          %2112 = vperm.xlu0 %2111, %v2038
          %v2113 = vpop.permute.xlu0 %2112
          %2116 = vset.pattern.permute.xlu0 0
          %2117 = vperm.xlu0 %2116, %v2039
          %v2118 = vpop.permute.xlu0 %2117
          %2121 = vset.pattern.permute.xlu0 0
          %2122 = vperm.xlu0 %2121, %v2040
          %v2123 = vpop.permute.xlu0 %2122
          %2126 = vset.pattern.permute.xlu0 0
          %2127 = vperm.xlu0 %2126, %v2041
          %v2128 = vpop.permute.xlu0 %2127
          %2131 = vset.pattern.permute.xlu0 0
          %2132 = vperm.xlu0 %2131, %v2042
          %v2133 = vpop.permute.xlu0 %2132
          %2136 = vset.pattern.permute.xlu0 0
          %2137 = vperm.xlu0 %2136, %v2043
          %v2138 = vpop.permute.xlu0 %2137
          %2141 = vset.pattern.permute.xlu0 0
          %2142 = vperm.xlu0 %2141, %v2044
          %v2143 = vpop.permute.xlu0 %2142
          %2146 = vset.pattern.permute.xlu0 0
          %2147 = vperm.xlu0 %2146, %v2045
          %v2148 = vpop.permute.xlu0 %2147
          %2151 = vset.pattern.permute.xlu0 0
          %2152 = vperm.xlu0 %2151, %v2046
          %v2153 = vpop.permute.xlu0 %2152
          %2156 = vset.pattern.permute.xlu0 0
          %2157 = vperm.xlu0 %2156, %v2047
          %v2158 = vpop.permute.xlu0 %2157
          %v2160 = vmul.f32 %v2083, %v2064
          %v2161 = vmul.f32 %v2088, %v2065
          %v2162 = vmul.f32 %v2093, %v2066
          %v2163 = vmul.f32 %v2098, %v2067
          %v2164 = vmul.f32 %v2103, %v2068
          %v2165 = vmul.f32 %v2108, %v2069
          %v2166 = vmul.f32 %v2113, %v2070
          %v2167 = vmul.f32 %v2118, %v2071
          %v2168 = vmul.f32 %v2123, %v2072
          %v2169 = vmul.f32 %v2128, %v2073
          %v2170 = vmul.f32 %v2133, %v2074
          %v2171 = vmul.f32 %v2138, %v2075
          %v2172 = vmul.f32 %v2143, %v2076
          %v2173 = vmul.f32 %v2148, %v2077
          %v2174 = vmul.f32 %v2153, %v2078
          %v2175 = vmul.f32 %v2158, %v2079
          %v2176 = vadd.f32 %v2016, %v2160
          %v2177 = vadd.f32 %v2017, %v2161
          %v2178 = vadd.f32 %v2018, %v2162
          %v2179 = vadd.f32 %v2019, %v2163
          %v2180 = vadd.f32 %v2020, %v2164
          %v2181 = vadd.f32 %v2021, %v2165
          %v2182 = vadd.f32 %v2022, %v2166
          %v2183 = vadd.f32 %v2023, %v2167
          %v2184 = vadd.f32 %v2024, %v2168
          %v2185 = vadd.f32 %v2025, %v2169
          %v2186 = vadd.f32 %v2026, %v2170
          %v2187 = vadd.f32 %v2027, %v2171
          %v2188 = vadd.f32 %v2028, %v2172
          %v2189 = vadd.f32 %v2029, %v2173
          %v2190 = vadd.f32 %v2030, %v2174
          %v2191 = vadd.f32 %v2031, %v2175
          %2192 = vst [vmem:[%s12] sm:$0xff] %v2176
          %2193 = vst [vmem:[%s12 + $0x8] sm:$0xff] %v2177
          %2194 = vst [vmem:[%s12 + $0x10] sm:$0xff] %v2178
          %2195 = vst [vmem:[%s12 + $0x18] sm:$0xff] %v2179
          %2196 = vst [vmem:[%s12 + $0x20] sm:$0xff] %v2180
          %2197 = vst [vmem:[%s12 + $0x28] sm:$0xff] %v2181
          %2198 = vst [vmem:[%s12 + $0x30] sm:$0xff] %v2182
          %2199 = vst [vmem:[%s12 + $0x38] sm:$0xff] %v2183
          %2200 = vst [vmem:[%s12 + $0x40] sm:$0xff] %v2184
          %2201 = vst [vmem:[%s12 + $0x48] sm:$0xff] %v2185
          %2202 = vst [vmem:[%s12 + $0x50] sm:$0xff] %v2186
          %2203 = vst [vmem:[%s12 + $0x58] sm:$0xff] %v2187
          %2204 = vst [vmem:[%s12 + $0x60] sm:$0xff] %v2188
          %2205 = vst [vmem:[%s12 + $0x68] sm:$0xff] %v2189
          %2206 = vst [vmem:[%s12 + $0x70] sm:$0xff] %v2190
          %2207 = vst [vmem:[%s12 + $0x78] sm:$0xff] %v2191
          %v2208 = vmul.f32 %v732, %v1827
          %v2209 = vmul.f32 %v733, %v1832
          %v2210 = vmul.f32 %v734, %v1837
          %v2211 = vmul.f32 %v735, %v1842
          %v2212 = vmul.f32 %v736, %v1847
          %v2213 = vmul.f32 %v737, %v1852
          %v2214 = vmul.f32 %v738, %v1857
          %v2215 = vmul.f32 %v739, %v1862
          %v2216 = vmul.f32 %v740, %v1867
          %v2217 = vmul.f32 %v741, %v1872
          %v2218 = vmul.f32 %v742, %v1877
          %v2219 = vmul.f32 %v743, %v1882
          %v2220 = vmul.f32 %v744, %v1887
          %v2221 = vmul.f32 %v745, %v1892
          %v2222 = vmul.f32 %v746, %v1897
          %v2223 = vmul.f32 %v747, %v1902
          %v2224 = vmul.f32 %v1489, %v1923
          %v2225 = vmul.f32 %v1491, %v1928
          %v2226 = vmul.f32 %v1493, %v1933
          %v2227 = vmul.f32 %v1495, %v1938
          %v2228 = vmul.f32 %v1497, %v1943
          %v2229 = vmul.f32 %v1499, %v1948
          %v2230 = vmul.f32 %v1501, %v1953
          %v2231 = vmul.f32 %v1503, %v1958
          %v2232 = vmul.f32 %v1505, %v1963
          %v2233 = vmul.f32 %v1507, %v1968
          %v2234 = vmul.f32 %v1509, %v1973
          %v2235 = vmul.f32 %v1511, %v1978
          %v2236 = vmul.f32 %v1513, %v1983
          %v2237 = vmul.f32 %v1515, %v1988
          %v2238 = vmul.f32 %v1517, %v1993
          %v2239 = vmul.f32 %v1519, %v1998
          %v2240 = vadd.f32 %v2208, %v2224
          %v2241 = vadd.f32 %v2209, %v2225
          %v2242 = vadd.f32 %v2210, %v2226
          %v2243 = vadd.f32 %v2211, %v2227
          %v2244 = vadd.f32 %v2212, %v2228
          %v2245 = vadd.f32 %v2213, %v2229
          %v2246 = vadd.f32 %v2214, %v2230
          %v2247 = vadd.f32 %v2215, %v2231
          %v2248 = vadd.f32 %v2216, %v2232
          %v2249 = vadd.f32 %v2217, %v2233
          %v2250 = vadd.f32 %v2218, %v2234
          %v2251 = vadd.f32 %v2219, %v2235
          %v2252 = vadd.f32 %v2220, %v2236
          %v2253 = vadd.f32 %v2221, %v2237
          %v2254 = vadd.f32 %v2222, %v2238
          %v2255 = vadd.f32 %v2223, %v2239
          %2256 = vst [vmem:[%s13] sm:$0xff] %v2240
          %2257 = vst [vmem:[%s13 + $0x8] sm:$0xff] %v2241
          %2258 = vst [vmem:[%s13 + $0x10] sm:$0xff] %v2242
          %2259 = vst [vmem:[%s13 + $0x18] sm:$0xff] %v2243
          %2260 = vst [vmem:[%s13 + $0x20] sm:$0xff] %v2244
          %2261 = vst [vmem:[%s13 + $0x28] sm:$0xff] %v2245
          %2262 = vst [vmem:[%s13 + $0x30] sm:$0xff] %v2246
          %2263 = vst [vmem:[%s13 + $0x38] sm:$0xff] %v2247
          %2264 = vst [vmem:[%s13 + $0x40] sm:$0xff] %v2248
          %2265 = vst [vmem:[%s13 + $0x48] sm:$0xff] %v2249
          %2266 = vst [vmem:[%s13 + $0x50] sm:$0xff] %v2250
          %2267 = vst [vmem:[%s13 + $0x58] sm:$0xff] %v2251
          %2268 = vst [vmem:[%s13 + $0x60] sm:$0xff] %v2252
          %2269 = vst [vmem:[%s13 + $0x68] sm:$0xff] %v2253
          %2270 = vst [vmem:[%s13 + $0x70] sm:$0xff] %v2254
          %2271 = vst [vmem:[%s13 + $0x78] sm:$0xff] %v2255
          %vm2272 = vcmask 7168
          %2273 = vst.msk [vmem:[%s14] sm:$0xff] %vm2272, %v1712
          %2274 = vst.msk [vmem:[%s14 + $0x8] sm:$0xff] %vm2272, %v1713
          %2275 = vst.msk [vmem:[%s14 + $0x10] sm:$0xff] %vm2272, %v1714
          %2276 = vst.msk [vmem:[%s14 + $0x18] sm:$0xff] %vm2272, %v1715
          %2277 = vst.msk [vmem:[%s14 + $0x20] sm:$0xff] %vm2272, %v1716
          %2278 = vst.msk [vmem:[%s14 + $0x28] sm:$0xff] %vm2272, %v1717
          %2279 = vst.msk [vmem:[%s14 + $0x30] sm:$0xff] %vm2272, %v1718
          %2280 = vst.msk [vmem:[%s14 + $0x38] sm:$0xff] %vm2272, %v1719
          %2281 = vst.msk [vmem:[%s14 + $0x40] sm:$0xff] %vm2272, %v1720
          %2282 = vst.msk [vmem:[%s14 + $0x48] sm:$0xff] %vm2272, %v1721
          %2283 = vst.msk [vmem:[%s14 + $0x50] sm:$0xff] %vm2272, %v1722
          %2284 = vst.msk [vmem:[%s14 + $0x58] sm:$0xff] %vm2272, %v1723
          %2285 = vst.msk [vmem:[%s14 + $0x60] sm:$0xff] %vm2272, %v1724
          %2286 = vst.msk [vmem:[%s14 + $0x68] sm:$0xff] %vm2272, %v1725
          %2287 = vst.msk [vmem:[%s14 + $0x70] sm:$0xff] %vm2272, %v1726
          %2288 = vst.msk [vmem:[%s14 + $0x78] sm:$0xff] %vm2272, %v1727
          %2289 = vmatprep.subr.mxu0 0.0
          %2290 = vmatpush1.msra.mxu0 %v715
          %2291 = vmatprep.subr.mxu0 0.0
          %2292 = vmatpush1.msra.mxu0 %v716
          %2293 = vmatprep.subr.mxu0 0.0
          %2294 = vmatpush1.msra.mxu0 %v717
          %2295 = vmatprep.subr.mxu0 0.0
          %2296 = vmatpush1.msra.mxu0 %v718
          %2297 = vmatprep.subr.mxu0 0.0
          %2298 = vmatpush1.msra.mxu0 %v719
          %2299 = vmatprep.subr.mxu0 0.0
          %2300 = vmatpush1.msra.mxu0 %v720
          %2301 = vmatprep.subr.mxu0 0.0
          %2302 = vmatpush1.msra.mxu0 %v721
          %2303 = vmatprep.subr.mxu0 0.0
          %2304 = vmatpush1.msra.mxu0 %v722
          %2305 = vmatprep.subr.mxu0 0.0
          %2306 = vmatpush1.msra.mxu0 %v723
          %2307 = vmatprep.subr.mxu0 0.0
          %2308 = vmatpush1.msra.mxu0 %v724
          %2309 = vmatprep.subr.mxu0 0.0
          %2310 = vmatpush1.msra.mxu0 %v725
          %2311 = vmatprep.subr.mxu0 0.0
          %2312 = vmatpush1.msra.mxu0 %v726
          %2313 = vmatprep.subr.mxu0 0.0
          %2314 = vmatpush1.msra.mxu0 %v727
          %2315 = vmatprep.subr.mxu0 0.0
          %2316 = vmatpush1.msra.mxu0 %v728
          %2317 = vmatprep.subr.mxu0 0.0
          %2318 = vmatpush1.msra.mxu0 %v729
          %2319 = vmatprep.subr.mxu0 0.0
          %2320 = vmatpush1.msra.mxu0 %v730
          %2321 = vmatprep.subr.mxu0 0.0
          %2322 = vmatpush1.msra.mxu0 0.0
          %2323 = vmatprep.subr.mxu0 0.0
          %2324 = vmatpush1.msra.mxu0 0.0
          %2325 = vmatprep.subr.mxu0 0.0
          %2326 = vmatpush1.msra.mxu0 0.0
          %2327 = vmatprep.subr.mxu0 0.0
          %2328 = vmatpush1.msra.mxu0 0.0
          %2329 = vmatprep.subr.mxu0 0.0
          %2330 = vmatpush1.msra.mxu0 0.0
          %2331 = vmatprep.subr.mxu0 0.0
          %2332 = vmatpush1.msra.mxu0 0.0
          %2333 = vmatprep.subr.mxu0 0.0
          %2334 = vmatpush1.msra.mxu0 0.0
          %2335 = vmatprep.subr.mxu0 0.0
          %2336 = vmatpush1.msra.mxu0 0.0
          %2337 = vmatprep.subr.mxu0 0.0
          %2338 = vmatpush1.msra.mxu0 0.0
          %2339 = vmatprep.subr.mxu0 0.0
          %2340 = vmatpush1.msra.mxu0 0.0
          %2341 = vmatprep.subr.mxu0 0.0
          %2342 = vmatpush1.msra.mxu0 0.0
          %2343 = vmatprep.subr.mxu0 0.0
          %2344 = vmatpush1.msra.mxu0 0.0
          %2345 = vmatprep.subr.mxu0 0.0
          %2346 = vmatpush1.msra.mxu0 0.0
          %2347 = vmatprep.subr.mxu0 0.0
          %2348 = vmatpush1.msra.mxu0 0.0
          %2349 = vmatprep.subr.mxu0 0.0
          %2350 = vmatpush1.msra.mxu0 0.0
          %2351 = vmatprep.subr.mxu0 0.0
          %2352 = vmatpush1.msra.mxu0 0.0
          %2353 = vmatprep.mubr.f32.mxu0 0.0
          %2354 = vmatmul.mubr.f32.gmra.mrb[0].mxu0 %v731
          %v2355 = vpop.f32.mrb[0].mxu0
          %v2356 = vadd.f32 0.0, %v2355
          %v2357 = vpop.f32.mrb[0].mxu0
          %2358 = vdwg.mxu0
          %2359 = vmatprep.subr.mxu0 0.0
          %2360 = vmatpush1.msra.mxu0 %v2176
          %2361 = vmatprep.subr.mxu0 0.0
          %2362 = vmatpush1.msra.mxu0 %v2177
          %2363 = vmatprep.subr.mxu0 0.0
          %2364 = vmatpush1.msra.mxu0 %v2178
          %2365 = vmatprep.subr.mxu0 0.0
          %2366 = vmatpush1.msra.mxu0 %v2179
          %2367 = vmatprep.subr.mxu0 0.0
          %2368 = vmatpush1.msra.mxu0 %v2180
          %2369 = vmatprep.subr.mxu0 0.0
          %2370 = vmatpush1.msra.mxu0 %v2181
          %2371 = vmatprep.subr.mxu0 0.0
          %2372 = vmatpush1.msra.mxu0 %v2182
          %2373 = vmatprep.subr.mxu0 0.0
          %2374 = vmatpush1.msra.mxu0 %v2183
          %2375 = vmatprep.subr.mxu0 0.0
          %2376 = vmatpush1.msra.mxu0 %v2184
          %2377 = vmatprep.subr.mxu0 0.0
          %2378 = vmatpush1.msra.mxu0 %v2185
          %2379 = vmatprep.subr.mxu0 0.0
          %2380 = vmatpush1.msra.mxu0 %v2186
          %2381 = vmatprep.subr.mxu0 0.0
          %2382 = vmatpush1.msra.mxu0 %v2187
          %2383 = vmatprep.subr.mxu0 0.0
          %2384 = vmatpush1.msra.mxu0 %v2188
          %2385 = vmatprep.subr.mxu0 0.0
          %2386 = vmatpush1.msra.mxu0 %v2189
          %2387 = vmatprep.subr.mxu0 0.0
          %2388 = vmatpush1.msra.mxu0 %v2190
          %2389 = vmatprep.subr.mxu0 0.0
          %2390 = vmatpush1.msra.mxu0 %v2191
          %2391 = vmatprep.subr.mxu0 0.0
          %2392 = vmatpush1.msra.mxu0 0.0
          %2393 = vmatprep.subr.mxu0 0.0
          %2394 = vmatpush1.msra.mxu0 0.0
          %2395 = vmatprep.subr.mxu0 0.0
          %2396 = vmatpush1.msra.mxu0 0.0
          %2397 = vmatprep.subr.mxu0 0.0
          %2398 = vmatpush1.msra.mxu0 0.0
          %2399 = vmatprep.subr.mxu0 0.0
          %2400 = vmatpush1.msra.mxu0 0.0
          %2401 = vmatprep.subr.mxu0 0.0
          %2402 = vmatpush1.msra.mxu0 0.0
          %2403 = vmatprep.subr.mxu0 0.0
          %2404 = vmatpush1.msra.mxu0 0.0
          %2405 = vmatprep.subr.mxu0 0.0
          %2406 = vmatpush1.msra.mxu0 0.0
          %2407 = vmatprep.subr.mxu0 0.0
          %2408 = vmatpush1.msra.mxu0 0.0
          %2409 = vmatprep.subr.mxu0 0.0
          %2410 = vmatpush1.msra.mxu0 0.0
          %2411 = vmatprep.subr.mxu0 0.0
          %2412 = vmatpush1.msra.mxu0 0.0
          %2413 = vmatprep.subr.mxu0 0.0
          %2414 = vmatpush1.msra.mxu0 0.0
          %2415 = vmatprep.subr.mxu0 0.0
          %2416 = vmatpush1.msra.mxu0 0.0
          %2417 = vmatprep.subr.mxu0 0.0
          %2418 = vmatpush1.msra.mxu0 0.0
          %2419 = vmatprep.subr.mxu0 0.0
          %2420 = vmatpush1.msra.mxu0 0.0
          %2421 = vmatprep.subr.mxu0 0.0
          %2422 = vmatpush1.msra.mxu0 0.0
          %2423 = vmatprep.mubr.f32.mxu0 0.0
          %2424 = vmatmul.mubr.f32.gmra.mrb[0].mxu0 %v731
          %v2425 = vpop.f32.mrb[0].mxu0
          %v2426 = vadd.f32 0.0, %v2425
          %v2427 = vpop.f32.mrb[0].mxu0
          %2428 = vdwg.mxu0
          %v2429 = vmul.f32 %v715, %v715
          %v2430 = vmul.f32 %v716, %v716
          %v2431 = vmul.f32 %v717, %v717
          %v2432 = vmul.f32 %v718, %v718
          %v2433 = vmul.f32 %v719, %v719
          %v2434 = vmul.f32 %v720, %v720
          %v2435 = vmul.f32 %v721, %v721
          %v2436 = vmul.f32 %v722, %v722
          %v2437 = vmul.f32 %v723, %v723
          %v2438 = vmul.f32 %v724, %v724
          %v2439 = vmul.f32 %v725, %v725
          %v2440 = vmul.f32 %v726, %v726
          %v2441 = vmul.f32 %v727, %v727
          %v2442 = vmul.f32 %v728, %v728
          %v2443 = vmul.f32 %v729, %v729
          %v2444 = vmul.f32 %v730, %v730
          %2445 = vmatprep.subr.mxu0 0.0
          %2446 = vmatpush1.xpose.msra.mxu0 %v2429
          %2447 = vmatprep.subr.mxu0 0.0
          %2448 = vmatpush1.xpose.msra.mxu0 %v2430
          %2449 = vmatprep.subr.mxu0 0.0
          %2450 = vmatpush1.xpose.msra.mxu0 %v2431
          %2451 = vmatprep.subr.mxu0 0.0
          %2452 = vmatpush1.xpose.msra.mxu0 %v2432
          %2453 = vmatprep.subr.mxu0 0.0
          %2454 = vmatpush1.xpose.msra.mxu0 %v2433
          %2455 = vmatprep.subr.mxu0 0.0
          %2456 = vmatpush1.xpose.msra.mxu0 %v2434
          %2457 = vmatprep.subr.mxu0 0.0
          %2458 = vmatpush1.xpose.msra.mxu0 %v2435
          %2459 = vmatprep.subr.mxu0 0.0
          %2460 = vmatpush1.xpose.msra.mxu0 %v2436
          %2461 = vmatprep.subr.mxu0 0.0
          %2462 = vmatpush1.xpose.msra.mxu0 %v2437
          %2463 = vmatprep.subr.mxu0 0.0
          %2464 = vmatpush1.xpose.msra.mxu0 %v2438
          %2465 = vmatprep.subr.mxu0 0.0
          %2466 = vmatpush1.xpose.msra.mxu0 %v2439
          %2467 = vmatprep.subr.mxu0 0.0
          %2468 = vmatpush1.xpose.msra.mxu0 %v2440
          %2469 = vmatprep.subr.mxu0 0.0
          %2470 = vmatpush1.xpose.msra.mxu0 %v2441
          %2471 = vmatprep.subr.mxu0 0.0
          %2472 = vmatpush1.xpose.msra.mxu0 %v2442
          %2473 = vmatprep.subr.mxu0 0.0
          %2474 = vmatpush1.xpose.msra.mxu0 %v2443
          %2475 = vmatprep.subr.mxu0 0.0
          %2476 = vmatpush1.xpose.msra.mxu0 %v2444
          %2477 = vmatprep.subr.mxu0 0.0
          %2478 = vmatpush1.xpose.msra.mxu0 0.0
          %2479 = vmatprep.subr.mxu0 0.0
          %2480 = vmatpush1.xpose.msra.mxu0 0.0
          %2481 = vmatprep.subr.mxu0 0.0
          %2482 = vmatpush1.xpose.msra.mxu0 0.0
          %2483 = vmatprep.subr.mxu0 0.0
          %2484 = vmatpush1.xpose.msra.mxu0 0.0
          %2485 = vmatprep.subr.mxu0 0.0
          %2486 = vmatpush1.xpose.msra.mxu0 0.0
          %2487 = vmatprep.subr.mxu0 0.0
          %2488 = vmatpush1.xpose.msra.mxu0 0.0
          %2489 = vmatprep.subr.mxu0 0.0
          %2490 = vmatpush1.xpose.msra.mxu0 0.0
          %2491 = vmatprep.subr.mxu0 0.0
          %2492 = vmatpush1.xpose.msra.mxu0 0.0
          %2493 = vmatprep.subr.mxu0 0.0
          %2494 = vmatpush1.xpose.msra.mxu0 0.0
          %2495 = vmatprep.subr.mxu0 0.0
          %2496 = vmatpush1.xpose.msra.mxu0 0.0
          %2497 = vmatprep.subr.mxu0 0.0
          %2498 = vmatpush1.xpose.msra.mxu0 0.0
          %2499 = vmatprep.subr.mxu0 0.0
          %2500 = vmatpush1.xpose.msra.mxu0 0.0
          %2501 = vmatprep.subr.mxu0 0.0
          %2502 = vmatpush1.xpose.msra.mxu0 0.0
          %2503 = vmatprep.subr.mxu0 0.0
          %2504 = vmatpush1.xpose.msra.mxu0 0.0
          %2505 = vmatprep.subr.mxu0 0.0
          %2506 = vmatpush1.xpose.msra.mxu0 0.0
          %2507 = vmatprep.subr.mxu0 0.0
          %2508 = vmatpush1.xpose.msra.mxu0 0.0
          %2509 = vmatprep.mubr.f32.mxu0 0.0
          %2510 = vmatmul.mubr.f32.gmra.mrb[0].mxu0 %v2426
          %v2511 = vpop.f32.mrb[0].mxu0
          %v2512 = vadd.f32 0.0, %v2511
          %v2513 = vpop.f32.mrb[0].mxu0
          %2514 = vdwg.mxu0
          %v2515 = vmul.f32 %v2356, %v2426
          %2516 = vmatprep.subr.mxu0 0.0
          %2517 = vmatpush1.xpose.msra.mxu0 %v715
          %2518 = vmatprep.subr.mxu0 0.0
          %2519 = vmatpush1.xpose.msra.mxu0 %v716
          %2520 = vmatprep.subr.mxu0 0.0
          %2521 = vmatpush1.xpose.msra.mxu0 %v717
          %2522 = vmatprep.subr.mxu0 0.0
          %2523 = vmatpush1.xpose.msra.mxu0 %v718
          %2524 = vmatprep.subr.mxu0 0.0
          %2525 = vmatpush1.xpose.msra.mxu0 %v719
          %2526 = vmatprep.subr.mxu0 0.0
          %2527 = vmatpush1.xpose.msra.mxu0 %v720
          %2528 = vmatprep.subr.mxu0 0.0
          %2529 = vmatpush1.xpose.msra.mxu0 %v721
          %2530 = vmatprep.subr.mxu0 0.0
          %2531 = vmatpush1.xpose.msra.mxu0 %v722
          %2532 = vmatprep.subr.mxu0 0.0
          %2533 = vmatpush1.xpose.msra.mxu0 %v723
          %2534 = vmatprep.subr.mxu0 0.0
          %2535 = vmatpush1.xpose.msra.mxu0 %v724
          %2536 = vmatprep.subr.mxu0 0.0
          %2537 = vmatpush1.xpose.msra.mxu0 %v725
          %2538 = vmatprep.subr.mxu0 0.0
          %2539 = vmatpush1.xpose.msra.mxu0 %v726
          %2540 = vmatprep.subr.mxu0 0.0
          %2541 = vmatpush1.xpose.msra.mxu0 %v727
          %2542 = vmatprep.subr.mxu0 0.0
          %2543 = vmatpush1.xpose.msra.mxu0 %v728
          %2544 = vmatprep.subr.mxu0 0.0
          %2545 = vmatpush1.xpose.msra.mxu0 %v729
          %2546 = vmatprep.subr.mxu0 0.0
          %2547 = vmatpush1.xpose.msra.mxu0 %v730
          %2548 = vmatprep.subr.mxu0 0.0
          %2549 = vmatpush1.xpose.msra.mxu0 0.0
          %2550 = vmatprep.subr.mxu0 0.0
          %2551 = vmatpush1.xpose.msra.mxu0 0.0
          %2552 = vmatprep.subr.mxu0 0.0
          %2553 = vmatpush1.xpose.msra.mxu0 0.0
          %2554 = vmatprep.subr.mxu0 0.0
          %2555 = vmatpush1.xpose.msra.mxu0 0.0
          %2556 = vmatprep.subr.mxu0 0.0
          %2557 = vmatpush1.xpose.msra.mxu0 0.0
          %2558 = vmatprep.subr.mxu0 0.0
          %2559 = vmatpush1.xpose.msra.mxu0 0.0
          %2560 = vmatprep.subr.mxu0 0.0
          %2561 = vmatpush1.xpose.msra.mxu0 0.0
          %2562 = vmatprep.subr.mxu0 0.0
          %2563 = vmatpush1.xpose.msra.mxu0 0.0
          %2564 = vmatprep.subr.mxu0 0.0
          %2565 = vmatpush1.xpose.msra.mxu0 0.0
          %2566 = vmatprep.subr.mxu0 0.0
          %2567 = vmatpush1.xpose.msra.mxu0 0.0
          %2568 = vmatprep.subr.mxu0 0.0
          %2569 = vmatpush1.xpose.msra.mxu0 0.0
          %2570 = vmatprep.subr.mxu0 0.0
          %2571 = vmatpush1.xpose.msra.mxu0 0.0
          %2572 = vmatprep.subr.mxu0 0.0
          %2573 = vmatpush1.xpose.msra.mxu0 0.0
          %2574 = vmatprep.subr.mxu0 0.0
          %2575 = vmatpush1.xpose.msra.mxu0 0.0
          %2576 = vmatprep.subr.mxu0 0.0
          %2577 = vmatpush1.xpose.msra.mxu0 0.0
          %2578 = vmatprep.subr.mxu0 0.0
          %2579 = vmatpush1.xpose.msra.mxu0 0.0
          %2580 = vmatprep.mubr.f32.mxu0 0.0
          %2581 = vmatmul.mubr.f32.gmra.mrb[0].mxu0 %v2515
          %v2582 = vpop.f32.mrb[0].mxu0
          %v2583 = vadd.f32 0.0, %v2582
          %v2584 = vpop.f32.mrb[0].mxu0
          %2585 = vdwg.mxu0
          %v2586 = vmul.f32 %v2356, %v2356
          %v2587 = vmul.f32 %v2586, %v2426
          %2588 = vadd.xlane.f32.xlu0 %v2587
          %v2589 = vpop.xlane.xlu0 %2588
          %v2590 = vmul.f32 %v2583, 2.0
          %v2591 = vsub.f32 %v2512, %v2590
          %v2592 = vadd.f32 %v2591, %v2589
          %v2593 = vstv %s780
          %v2594 = vmul.f32 %v2593, %v2592
          %v2595 = vmul.f32 %v2594, 0.5
          %v2596 = vadd.f32 %v855, %v2595
          %2597 = vst [vmem:[#allocation10] sm:$0xff] %v2596
        $region80: #{_fused_forward.1} parent=59 // pred_fallthru
          _
        // Predicated region
        $region81: #{_fused_forward.1} parent=59 // pred_check
          %p2598 = pneg %p268
        $region82: #{_fused_forward.1} parent=59 // pred_check_branch
          %2600 = sbr.rel (%p2598) target = $region84
        $region83: #{_fused_forward.1} parent=59 // pred_region
          %s2602 = ssub.s32 128, 128
          %2603 = vsyncadd [#allocation6], %s2602
          %s2605 = sshll.u32 [#allocation10], 4
          %s2606 = int_to_ptr.vmem [resolvable:$true] %s2605
          %2608 = dma.vmem_to_hbm [thread:$0]  %s2606, 128, %s10, [#allocation6]
        $region84: #{_fused_forward.1} parent=59 // pred_fallthru
          _
        // Predicated region
        $region85: #{_fused_forward.1} parent=59 // pred_check
          %p2609 = pneg %p289
        $region86: #{_fused_forward.1} parent=59 // pred_check_branch
          %2611 = sbr.rel (%p2609) target = $region88
        $region87: #{_fused_forward.1} parent=59 // pred_region
          %s2613 = ssub.s32 128, 128
          %2614 = vsyncadd [#allocation12], %s2613
          %s2616 = sshll.u32 [#allocation11], 4
          %s2617 = int_to_ptr.vmem [resolvable:$true] %s2616
          %2619 = dma.vmem_to_hbm [thread:$0]  %s2617, 128, %s11, [#allocation12]
        $region88: #{_fused_forward.1} parent=59 // pred_fallthru
          _
        // Predicated region
        $region89: #{_fused_forward.1} parent=59 // pred_check
          %p2620 = pneg %p310
        $region90: #{_fused_forward.1} parent=59 // pred_check_branch
          %2622 = sbr.rel (%p2620) target = $region92
        $region91: #{_fused_forward.1} parent=59 // pred_region
          _
        $region92: #{_fused_forward.1} parent=59 // pred_fallthru
          _
        // Predicated region
        $region93: #{_fused_forward.1} parent=59 // pred_check
          %p2623 = pneg %p331
        $region94: #{_fused_forward.1} parent=59 // pred_check_branch
          %2625 = sbr.rel (%p2623) target = $region96
        $region95: #{_fused_forward.1} parent=59 // pred_region
          _
        $region96: #{_fused_forward.1} parent=59 // pred_fallthru
          _
        // Predicated region
        $region97: #{_fused_forward.1} parent=59 // pred_check
          %p2626 = pneg %p352
        $region98: #{_fused_forward.1} parent=59 // pred_check_branch
          %2628 = sbr.rel (%p2626) target = $region100
        $region99: #{_fused_forward.1} parent=59 // pred_region
          _
        $region100: #{_fused_forward.1} parent=59 // pred_fallthru
          _
        // Predicated region
        $region101: #{_fused_forward.1} parent=59 // pred_check
          %p2629 = pneg %p268
        $region102: #{_fused_forward.1} parent=59 // pred_check_branch
          %2631 = sbr.rel (%p2629) target = $region104
        $region103: #{_fused_forward.1} parent=59 // pred_region
          %2632 = dma.done [#allocation6], 128
        $region104: #{_fused_forward.1} parent=59 // pred_fallthru
          _
        // Predicated region
        $region105: #{_fused_forward.1} parent=59 // pred_check
          %p2633 = pneg %p289
        $region106: #{_fused_forward.1} parent=59 // pred_check_branch
          %2635 = sbr.rel (%p2633) target = $region108
        $region107: #{_fused_forward.1} parent=59 // pred_region
          %2636 = dma.done [#allocation12], 128
        $region108: #{_fused_forward.1} parent=59 // pred_fallthru
          _
        // Predicated region
        $region109: #{_fused_forward.1} parent=59 // pred_check
          %p2637 = pneg %p310
        $region110: #{_fused_forward.1} parent=59 // pred_check_branch
          %2639 = sbr.rel (%p2637) target = $region112
        $region111: #{_fused_forward.1} parent=59 // pred_region
          _
        $region112: #{_fused_forward.1} parent=59 // pred_fallthru
          _
        // Predicated region
        $region113: #{_fused_forward.1} parent=59 // pred_check
          %p2640 = pneg %p331
        $region114: #{_fused_forward.1} parent=59 // pred_check_branch
          %2642 = sbr.rel (%p2640) target = $region116
        $region115: #{_fused_forward.1} parent=59 // pred_region
          _
        $region116: #{_fused_forward.1} parent=59 // pred_fallthru
          _
        // Predicated region
        $region117: #{_fused_forward.1} parent=59 // pred_check
          %p2643 = pneg %p352
        $region118: #{_fused_forward.1} parent=59 // pred_check_branch
          %2645 = sbr.rel (%p2643) target = $region120
        $region119: #{_fused_forward.1} parent=59 // pred_region
          _
        $region120: #{_fused_forward.1} parent=59 // pred_fallthru
          _
      $region60: #{_fused_forward.1} parent=5 // pred_fallthru
        _
      %p2646 = scmp.le.s32.totalorder 2, %s30
      // Predicated region
      $region121: #{_fused_forward.1} parent=5 // pred_check
        %p2647 = pneg %p2646
      $region122: #{_fused_forward.1} parent=5 // pred_check_branch
        %2649 = sbr.rel (%p2647) target = $region124
      $region123: #{_fused_forward.1} parent=5 // pred_region
        %s2650 = ssub.s32 %s30, 2
      $region124: #{_fused_forward.1} parent=5 // pred_fallthru
        _
    $region6: #{_fused_forward.1} parent=1 // loop_footer
      %s34 = sadd.s32 1, %s30
    $region7: #{_fused_forward.1} parent=1 // loop_footer_branch
      %29 = sbr.rel target = $region3
    $region8: #{_fused_forward.1} parent=1 // loop_exit
      _
    %2651 = vsyncpa [#allocation5], 1
    %s2652 = scalar_lea.sflag [#allocation5], 1
    %2653 = vsyncpa %s2652, 1
    %2654 = vsyncpa [#allocation8], 1
    %s2655 = scalar_lea.sflag [#allocation8], 1
    %2656 = vsyncpa %s2655, 1
    %2657 = vsyncpa [#allocation6], 1
    %s2658 = scalar_lea.sflag [#allocation6], 1
    %2659 = vsyncpa %s2658, 1
    %2660 = vsyncpa [#allocation12], 1

</llo_original>
